<compile_context>
chip_gen: v7x
topology: tpu7x:2x2x1
jax: 0.10.0
libtpu: 0.0.40
codegen_flags: <defaults>
</compile_context>

<pallas_src>
import functools

import jax
import jax.numpy as jnp
from jax.experimental import pallas as pl
from jax.experimental.pallas import tpu as pltpu


# ---------------------------------------------------------------------------
# Kernel: T timesteps in one pallas_call, state carried in output refs.
# ---------------------------------------------------------------------------
def _manager_seq_kernel(lb_ref,                      # scalar prefetch: (T,) int32 = (tick0+t) % r
                        z_ref, h0_ref, c0_ref,
                        wsp_ref, bsp_ref,
                        wih_ref, bg_ref, whh_ref,
                        wvp_ref, bv_ref,
                        packed_ref, g_ref, h_ref, c_ref,
                        *, d, hidden, s_pad):
    t = pl.program_id(0)

    # Load the initial recurrent state into the VMEM-resident output refs once.
    @pl.when(t == 0)
    def _():
        h_ref[...] = h0_ref[...]
        c_ref[...] = c0_ref[...]

    left = lb_ref[t] * d                               # dLSTM window start (dynamic)

    # ---- f_Mspace: Linear(d, d) + ReLU, lane-padded to s_pad ---------------
    z = z_ref[0]
    s_full = jnp.maximum(
        jnp.dot(z, wsp_ref[...], preferred_element_type=jnp.float32) + bsp_ref[...],
        0.0)                                           # (B, s_pad); lanes >= d are exactly 0

    # ---- dLSTM mask over hidden lanes --------------------------------------
    col = jax.lax.broadcasted_iota(jnp.int32, (1, hidden), 1)
    mask = jnp.logical_and(col >= left, col < left + d).astype(jnp.float32)

    h_prev = h_ref[...]
    c_prev = c_ref[...]
    h_m = h_prev * mask
    c_m = c_prev * mask

    # ---- LSTMCell(input=s, state=(h*mask, c*mask)) -------------------------
    # Gate columns were pre-permuted in the wrapper to (i, f, o, g):
    # one sigmoid over the contiguous i|f|o slab, one tanh for g.
    gates = (jnp.dot(s_full, wih_ref[...], preferred_element_type=jnp.float32)
             + jnp.dot(h_m, whh_ref[...], preferred_element_type=jnp.float32)
             + bg_ref[...])
    ifo = jax.nn.sigmoid(gates[:, :3 * hidden])
    i_g = ifo[:, 0 * hidden:1 * hidden]
    f_g = ifo[:, 1 * hidden:2 * hidden]
    o_g = ifo[:, 2 * hidden:3 * hidden]
    g_g = jnp.tanh(gates[:, 3 * hidden:4 * hidden])

    c_new = f_g * c_m + i_g * g_g
    h_new = o_g * jnp.tanh(c_new)
    h_ref[...] = h_new
    c_ref[...] = c_new

    # ---- g = L2-normalize(g_hat): norm over masked full width --------------
    # (avoids an unaligned dynamic lane slice; window extracted in the wrapper)
    gh = h_new * mask
    denom = jnp.maximum(jnp.sqrt(jnp.sum(gh * gh, axis=-1, keepdims=True)), 1e-12)
    g_ref[0] = gh / denom

    # ---- value head: VPU/XLU reduce with the window-placed Wv row ----------
    value = jnp.sum(h_new * wvp_ref[0], axis=-1, keepdims=True) + bv_ref[0, 0]

    # ---- lane-dense packed output: lanes [0:d] = s, lane d = value ---------
    scol = jax.lax.broadcasted_iota(jnp.int32, (1, s_pad), 1)
    packed_ref[0] = s_full + value * (scol == d).astype(jnp.float32)


# ---------------------------------------------------------------------------
# Wrapper: parameter packing + pallas_call + lane-dense output unpacking.
# ---------------------------------------------------------------------------
def manager_dlstm_forward_seq(z_seq, states_M, params, *, d, r, tick0=0):
    """Apply Manager_dLSTM.forward for T consecutive ticks in one kernel.

    z_seq: (T, B, d). Returns (value (T,B,1), g (T,B,d), s (T,B,d), (h_T, c_T)).
    """
    h0, c0 = states_M
    T, B, _ = z_seq.shape
    H = d * r
    s_pad = ((d + 1 + 127) // 128) * 128          # lane-dense slab: s lanes + value lane
    f32 = jnp.float32

    # --- pack parameters for the kernel (cheap, done in the XLA wrapper) ----
    # gate-column permutation (i, f, g, o) -> (i, f, o, g)
    perm = jnp.concatenate([jnp.arange(0, H), jnp.arange(H, 2 * H),
                            jnp.arange(3 * H, 4 * H), jnp.arange(2 * H, 3 * H)])
    wsp_k = jnp.zeros((d, s_pad), f32).at[:, :d].set(params["Wsp"])
    bsp_k = jnp.zeros((1, s_pad), f32).at[:, :d].set(params["bsp"])
    wih_k = jnp.zeros((s_pad, 4 * H), f32).at[:d, :].set(params["Wih"][:, perm])
    whh_k = params["Whh"][:, perm]
    bg_k = (params["bih"] + params["bhh"])[perm].reshape(1, 4 * H)   # fused LSTM bias
    wv_row = params["Wv"].reshape(1, d)
    wvp_k = jnp.kron(jnp.eye(r, dtype=f32), wv_row).reshape(r, 1, H)  # Wv placed per window
    bv_k = params["bv"].reshape(1, 1).astype(f32)

    # per-step window block index (scalar prefetch -> no recompile per tick)
    lb = ((tick0 + jnp.arange(T)) % r).astype(jnp.int32)

    grid_spec = pltpu.PrefetchScalarGridSpec(
        num_scalar_prefetch=1,
        grid=(T,),
        in_specs=[
            pl.BlockSpec((1, B, d), lambda t, sl: (t, 0, 0)),        # z_t
            pl.BlockSpec((B, H), lambda t, sl: (0, 0)),              # h0
            pl.BlockSpec((B, H), lambda t, sl: (0, 0)),              # c0
            pl.BlockSpec((d, s_pad), lambda t, sl: (0, 0)),          # Wsp (resident)
            pl.BlockSpec((1, s_pad), lambda t, sl: (0, 0)),          # bsp
            pl.BlockSpec((s_pad, 4 * H), lambda t, sl: (0, 0)),      # Wih (resident)
            pl.BlockSpec((1, 4 * H), lambda t, sl: (0, 0)),          # fused gate bias
            pl.BlockSpec((H, 4 * H), lambda t, sl: (0, 0)),          # Whh (resident)
            pl.BlockSpec((1, 1, H), lambda t, sl: (sl[t], 0, 0)),    # Wv row at live window
            pl.BlockSpec(memory_space=pltpu.MemorySpace.SMEM),       # bv scalar
        ],
        out_specs=(
            pl.BlockSpec((1, B, s_pad), lambda t, sl: (t, 0, 0)),    # packed [s | value]
            pl.BlockSpec((1, B, H), lambda t, sl: (t, 0, 0)),        # g (full width, masked)
            pl.BlockSpec((B, H), lambda t, sl: (0, 0)),              # h_T (state carry)
            pl.BlockSpec((B, H), lambda t, sl: (0, 0)),              # c_T (state carry)
        ),
    )
    out_shape = (
        jax.ShapeDtypeStruct((T, B, s_pad), f32),
        jax.ShapeDtypeStruct((T, B, H), f32),
        jax.ShapeDtypeStruct((B, H), f32),
        jax.ShapeDtypeStruct((B, H), f32),
    )
    kernel = functools.partial(_manager_seq_kernel, d=d, hidden=H, s_pad=s_pad)

    packed, g_full, h_T, c_T = pl.pallas_call(
        kernel,
        grid_spec=grid_spec,
        out_shape=out_shape,
        compiler_params=pltpu.CompilerParams(
            dimension_semantics=("arbitrary",)),   # state carried across steps
    )(lb, z_seq, h0, c0, wsp_k, bsp_k, wih_k, bg_k, whh_k, wvp_k, bv_k)

    # unpack lane-dense outputs
    s_seq = packed[:, :, :d]
    value_seq = packed[:, :, d:d + 1]
    idx = (lb * d)[:, None, None] + jnp.arange(d, dtype=jnp.int32)[None, None, :]
    g_seq = jnp.take_along_axis(g_full, jnp.broadcast_to(idx, (T, B, d)), axis=2)
    return value_seq, g_seq, s_seq, (h_T, c_T)


def manager_dlstm_forward(z, states_M, params, *, d, r, tick=0, reset_value_grad=None):
    """Single-step API parity with Manager_dLSTM.forward (reset_value_grad unused)."""
    value, g, s, states = manager_dlstm_forward_seq(
        z[None], states_M, params, d=d, r=r, tick0=tick)
    return value[0], g[0], s[0], states


# ---------------------------------------------------------------------------
# Deterministic parameters (PyTorch-style uniform(-k, k) init) and reference.
# ---------------------------------------------------------------------------
def init_params(key, d, r):
    H = d * r
    ks = jax.random.split(key, 8)

    def u(k, shape, fan_in):
        bound = 1.0 / jnp.sqrt(fan_in)
        return jax.random.uniform(k, shape, jnp.float32, -bound, bound)

    return {
        "Wsp": u(ks[0], (d, d), d), "bsp": u(ks[1], (d,), d),
        "Wih": u(ks[2], (d, 4 * H), H), "bih": u(ks[3], (4 * H,), H),
        "Whh": u(ks[4], (H, 4 * H), H), "bhh": u(ks[5], (4 * H,), H),
        "Wv": u(ks[6], (d, 1), d), "bv": u(ks[7], (1,), d),
    }


def reference_forward_seq(z_seq, states_M, params, *, d, r, tick0=0):
    """Pure-JAX step-by-step reference mirroring the PyTorch module."""
    h, c = states_M
    H = d * r
    vals, gs, ss = [], [], []
    for t in range(z_seq.shape[0]):
        left = ((tick0 + t) % r) * d
        z = z_seq[t]
        s = jax.nn.relu(z @ params["Wsp"] + params["bsp"])
        mask = jnp.zeros((1, H), jnp.float32).at[:, left:left + d].set(1.0)
        hm, cm = h * mask, c * mask
        gates = (s @ params["Wih"] + params["bih"]
                 + hm @ params["Whh"] + params["bhh"])
        i_g = jax.nn.sigmoid(gates[:, 0 * H:1 * H])
        f_g = jax.nn.sigmoid(gates[:, 1 * H:2 * H])
        g_g = jnp.tanh(gates[:, 2 * H:3 * H])
        o_g = jax.nn.sigmoid(gates[:, 3 * H:4 * H])
        c = f_g * cm + i_g * g_g
        h = o_g * jnp.tanh(c)
        g_hat = h[:, left:left + d]
        norm = jnp.linalg.norm(g_hat, axis=1, keepdims=True)
        gs.append(g_hat / jnp.maximum(norm, 1e-12))
        vals.append(g_hat @ params["Wv"] + params["bv"])
        ss.append(s)
    return jnp.stack(vals), jnp.stack(gs), jnp.stack(ss), (h, c)


if __name__ == "__main__":
    D = 32   # manager embedding dim d
    R = 4    # dilation factor r -> LSTM hidden = d * r = 128
    B = 8    # batch
    T = 8    # fused timesteps (two full dilation cycles)

    key = jax.random.PRNGKey(0)
    k_p, k_z, k_h, k_c = jax.random.split(key, 4)
    params = init_params(k_p, D, R)
    z_seq = jax.random.normal(k_z, (T, B, D), jnp.float32)
    h0 = jax.random.uniform(k_h, (B, D * R), jnp.float32)   # init_state uses torch.rand
    c0 = jax.random.uniform(k_c, (B, D * R), jnp.float32)

    fwd = jax.jit(functools.partial(manager_dlstm_forward_seq, d=D, r=R, tick0=0))
    value, g, s, (h_T, c_T) = fwd(z_seq, (h0, c0), params)
    jax.block_until_ready((value, g, s, h_T, c_T))

    with jax.default_matmul_precision("highest"):
        rv, rg, rs, (rh, rc) = reference_forward_seq(
            z_seq, (h0, c0), params, d=D, r=R, tick0=0)
        jax.block_until_ready((rv, rg, rs, rh, rc))

    def _check(name, got, want, tol=1e-4):
        err = float(jnp.max(jnp.abs(got - want)))
        assert err < tol, f"{name} mismatch vs reference: max abs err {err}"

    _check("value", value, rv)
    _check("g", g, rg)
    _check("s", s, rs)
    _check("h_T", h_T, rh)
    _check("c_T", c_T, rc)

    print("KERNEL_OK")
</pallas_src>

<mosaic_0001>
module attributes {stable_mosaic.version = 11 : i64} {
  func.func private @main(%arg0: i32) attributes {dimension_semantics = [#tpu.dimension_semantics<core_parallel>], iteration_bounds = array<i64: 2>, tpu.core_type = #tpu.core_type<sc_scalar_subcore>, window_params = []} {
    return
  }
}

module attributes {stable_mosaic.version = 11 : i64} {
  func.func private @main(%arg0: i32) attributes {dimension_semantics = [#tpu.dimension_semantics<core_parallel>], iteration_bounds = array<i64: 2>, tpu.core_type = #tpu.core_type<sc_scalar_subcore>, window_params = []} {
    return
  }
}

module attributes {stable_mosaic.version = 11 : i64} {
  func.func @_manager_seq_kernel(%arg0: i32, %arg1: memref<8xi32, #tpu.memory_space<smem>>, %arg2: memref<1x8x32xf32, #tpu.memory_space<vmem>>, %arg3: memref<8x128xf32, #tpu.memory_space<vmem>>, %arg4: memref<8x128xf32, #tpu.memory_space<vmem>>, %arg5: memref<32x128xf32, #tpu.memory_space<vmem>>, %arg6: memref<1x128xf32, #tpu.memory_space<vmem>>, %arg7: memref<128x512xf32, #tpu.memory_space<vmem>>, %arg8: memref<1x512xf32, #tpu.memory_space<vmem>>, %arg9: memref<128x512xf32, #tpu.memory_space<vmem>>, %arg10: memref<1x1x128xf32, #tpu.memory_space<vmem>>, %arg11: memref<1x1xf32, #tpu.memory_space<smem>>, %arg12: memref<1x8x128xf32, #tpu.memory_space<vmem>>, %arg13: memref<1x8x128xf32, #tpu.memory_space<vmem>>, %arg14: memref<8x128xf32, #tpu.memory_space<vmem>>, %arg15: memref<8x128xf32, #tpu.memory_space<vmem>>) attributes {dimension_semantics = [#tpu.dimension_semantics<arbitrary>], iteration_bounds = array<i64: 8>, scalar_prefetch = 1 : i64, scratch_operands = 0 : i64, tpu.core_type = #tpu.core_type<tc>, window_params = [{transform_indices = @transform_0, window_bounds = array<i64: 1, 8, 32>}, {pipeline_mode = #tpu.pipeline_mode<synchronous>, transform_indices = @transform_1, window_bounds = array<i64: 8, 128>}, {pipeline_mode = #tpu.pipeline_mode<synchronous>, transform_indices = @transform_2, window_bounds = array<i64: 8, 128>}, {pipeline_mode = #tpu.pipeline_mode<synchronous>, transform_indices = @transform_3, window_bounds = array<i64: 32, 128>}, {pipeline_mode = #tpu.pipeline_mode<synchronous>, transform_indices = @transform_4, window_bounds = array<i64: 1, 128>}, {pipeline_mode = #tpu.pipeline_mode<synchronous>, transform_indices = @transform_5, window_bounds = array<i64: 128, 512>}, {pipeline_mode = #tpu.pipeline_mode<synchronous>, transform_indices = @transform_6, window_bounds = array<i64: 1, 512>}, {pipeline_mode = #tpu.pipeline_mode<synchronous>, transform_indices = @transform_7, window_bounds = array<i64: 128, 512>}, {transform_indices = @transform_8, window_bounds = array<i64: 1, 1, 128>}, {transform_indices = @transform_9, window_bounds = array<i64: 1, 1>}, {transform_indices = @transform_10, window_bounds = array<i64: 1, 8, 128>}, {transform_indices = @transform_11, window_bounds = array<i64: 1, 8, 128>}, {pipeline_mode = #tpu.pipeline_mode<synchronous>, transform_indices = @transform_12, window_bounds = array<i64: 8, 128>}, {pipeline_mode = #tpu.pipeline_mode<synchronous>, transform_indices = @transform_13, window_bounds = array<i64: 8, 128>}]} {
    %c0_i32 = arith.constant 0 : i32
    %0 = arith.cmpi eq, %arg0, %c0_i32 : i32
    %1 = arith.extui %0 : i1 to i32
    %c0_i32_0 = arith.constant 0 : i32
    %2 = arith.cmpi ne, %1, %c0_i32_0 : i32
    scf.if %2 {
      %c0_41 = arith.constant 0 : index
      %c0_42 = arith.constant 0 : index
      %90 = vector.load %arg3[%c0_41, %c0_42] : memref<8x128xf32, #tpu.memory_space<vmem>>, vector<8x128xf32>
      %c0_43 = arith.constant 0 : index
      %c0_44 = arith.constant 0 : index
      %91 = vector.load %arg14[%c0_43, %c0_44] : memref<8x128xf32, #tpu.memory_space<vmem>>, vector<8x128xf32>
      tpu.vector_store %arg14[%c0_43, %c0_44], %90 {strides = array<i32>} : memref<8x128xf32, #tpu.memory_space<vmem>>, vector<8x128xf32>,
      %c0_45 = arith.constant 0 : index
      %c0_46 = arith.constant 0 : index
      %92 = vector.load %arg4[%c0_45, %c0_46] : memref<8x128xf32, #tpu.memory_space<vmem>>, vector<8x128xf32>
      %c0_47 = arith.constant 0 : index
      %c0_48 = arith.constant 0 : index
      %93 = vector.load %arg15[%c0_47, %c0_48] : memref<8x128xf32, #tpu.memory_space<vmem>>, vector<8x128xf32>
      tpu.vector_store %arg15[%c0_47, %c0_48], %92 {strides = array<i32>} : memref<8x128xf32, #tpu.memory_space<vmem>>, vector<8x128xf32>,
    } else {
    }
    %3 = arith.index_cast %arg0 : i32 to index
    %4 = memref.load %arg1[%3] : memref<8xi32, #tpu.memory_space<smem>>
    %c32_i32 = arith.constant 32 : i32
    %5 = arith.muli %4, %c32_i32 : i32
    %c0 = arith.constant 0 : index
    %c0_1 = arith.constant 0 : index
    %c0_2 = arith.constant 0 : index
    %6 = vector.load %arg2[%c0, %c0_1, %c0_2] : memref<1x8x32xf32, #tpu.memory_space<vmem>>, vector<1x8x32xf32>
    %7 = vector.shape_cast %6 : vector<1x8x32xf32> to vector<8x32xf32>
    %c0_3 = arith.constant 0 : index
    %c0_4 = arith.constant 0 : index
    %8 = vector.load %arg5[%c0_3, %c0_4] : memref<32x128xf32, #tpu.memory_space<vmem>>, vector<32x128xf32>
    %cst = arith.constant dense<0.000000e+00> : vector<8x128xf32>
    %9 = tpu.matmul %7, %8, %cst {dimension_numbers = #tpu.dot_dimension_numbers<[1], [0], [0], [1], [0, 0, 1, 1], [], []>} : vector<8x32xf32>, vector<32x128xf32>, vector<8x128xf32> -> vector<8x128xf32>
    %c0_5 = arith.constant 0 : index
    %c0_6 = arith.constant 0 : index
    %10 = vector.load %arg6[%c0_5, %c0_6] : memref<1x128xf32, #tpu.memory_space<vmem>>, vector<1x128xf32>
    %11 = vector.broadcast %10 : vector<1x128xf32> to vector<8x128xf32>
    %12 = arith.addf %9, %11 : vector<8x128xf32>
    %cst_7 = arith.constant 0.000000e+00 : f32
    %13 = vector.broadcast %cst_7 : f32 to vector<8x128xf32>
    %14 = arith.maximumf %12, %13 : vector<8x128xf32>
    %15 = tpu.iota {dimensions = array<i32: 1>} : vector<1x128xi32>
    %16 = vector.broadcast %5 : i32 to vector<1x128xi32>
    %17 = arith.cmpi sge, %15, %16 : vector<1x128xi32>
    %c32_i32_8 = arith.constant 32 : i32
    %18 = arith.addi %5, %c32_i32_8 : i32
    %19 = vector.broadcast %18 : i32 to vector<1x128xi32>
    %20 = arith.cmpi slt, %15, %19 : vector<1x128xi32>
    %21 = arith.andi %17, %20 : vector<1x128xi1>
    %22 = arith.extui %21 : vector<1x128xi1> to vector<1x128xi32>
    %23 = arith.sitofp %22 : vector<1x128xi32> to vector<1x128xf32>
    %c0_9 = arith.constant 0 : index
    %c0_10 = arith.constant 0 : index
    %24 = vector.load %arg14[%c0_9, %c0_10] : memref<8x128xf32, #tpu.memory_space<vmem>>, vector<8x128xf32>
    %c0_11 = arith.constant 0 : index
    %c0_12 = arith.constant 0 : index
    %25 = vector.load %arg15[%c0_11, %c0_12] : memref<8x128xf32, #tpu.memory_space<vmem>>, vector<8x128xf32>
    %26 = vector.broadcast %23 : vector<1x128xf32> to vector<8x128xf32>
    %27 = arith.mulf %24, %26 : vector<8x128xf32>
    %28 = vector.broadcast %23 : vector<1x128xf32> to vector<8x128xf32>
    %29 = arith.mulf %25, %28 : vector<8x128xf32>
    %c0_13 = arith.constant 0 : index
    %c0_14 = arith.constant 0 : index
    %30 = vector.load %arg7[%c0_13, %c0_14] : memref<128x512xf32, #tpu.memory_space<vmem>>, vector<128x512xf32>
    %cst_15 = arith.constant dense<0.000000e+00> : vector<8x512xf32>
    %31 = tpu.matmul %14, %30, %cst_15 {dimension_numbers = #tpu.dot_dimension_numbers<[1], [0], [0], [1], [0, 0, 1, 1], [], []>} : vector<8x128xf32>, vector<128x512xf32>, vector<8x512xf32> -> vector<8x512xf32>
    %c0_16 = arith.constant 0 : index
    %c0_17 = arith.constant 0 : index
    %32 = vector.load %arg9[%c0_16, %c0_17] : memref<128x512xf32, #tpu.memory_space<vmem>>, vector<128x512xf32>
    %cst_18 = arith.constant dense<0.000000e+00> : vector<8x512xf32>
    %33 = tpu.matmul %27, %32, %cst_18 {dimension_numbers = #tpu.dot_dimension_numbers<[1], [0], [0], [1], [0, 0, 1, 1], [], []>} : vector<8x128xf32>, vector<128x512xf32>, vector<8x512xf32> -> vector<8x512xf32>
    %34 = arith.addf %31, %33 : vector<8x512xf32>
    %c0_19 = arith.constant 0 : index
    %c0_20 = arith.constant 0 : index
    %35 = vector.load %arg8[%c0_19, %c0_20] : memref<1x512xf32, #tpu.memory_space<vmem>>, vector<1x512xf32>
    %36 = vector.broadcast %35 : vector<1x512xf32> to vector<8x512xf32>
    %37 = arith.addf %34, %36 : vector<8x512xf32>
    %38 = vector.extract_strided_slice %37 {offsets = [0, 0], sizes = [8, 384], strides = [1, 1]} : vector<8x512xf32> to vector<8x384xf32>
    %39 = arith.negf %38 : vector<8x384xf32>
    %40 = math.exp %39 : vector<8x384xf32>
    %cst_21 = arith.constant 1.000000e+00 : f32
    %41 = vector.broadcast %cst_21 : f32 to vector<8x384xf32>
    %42 = arith.addf %41, %40 : vector<8x384xf32>
    %43 = arith.divf %41, %42 : vector<8x384xf32>
    %44 = vector.extract_strided_slice %43 {offsets = [0, 0], sizes = [8, 128], strides = [1, 1]} : vector<8x384xf32> to vector<8x128xf32>
    %45 = vector.extract_strided_slice %43 {offsets = [0, 128], sizes = [8, 128], strides = [1, 1]} : vector<8x384xf32> to vector<8x128xf32>
    %46 = vector.extract_strided_slice %43 {offsets = [0, 256], sizes = [8, 128], strides = [1, 1]} : vector<8x384xf32> to vector<8x128xf32>
    %47 = vector.extract_strided_slice %37 {offsets = [0, 384], sizes = [8, 128], strides = [1, 1]} : vector<8x512xf32> to vector<8x128xf32>
    %48 = math.tanh %47 : vector<8x128xf32>
    %49 = arith.mulf %45, %29 : vector<8x128xf32>
    %50 = arith.mulf %44, %48 : vector<8x128xf32>
    %51 = arith.addf %49, %50 : vector<8x128xf32>
    %52 = math.tanh %51 : vector<8x128xf32>
    %53 = arith.mulf %46, %52 : vector<8x128xf32>
    %c0_22 = arith.constant 0 : index
    %c0_23 = arith.constant 0 : index
    %54 = vector.load %arg14[%c0_22, %c0_23] : memref<8x128xf32, #tpu.memory_space<vmem>>, vector<8x128xf32>
    tpu.vector_store %arg14[%c0_22, %c0_23], %53 {strides = array<i32>} : memref<8x128xf32, #tpu.memory_space<vmem>>, vector<8x128xf32>,
    %c0_24 = arith.constant 0 : index
    %c0_25 = arith.constant 0 : index
    %55 = vector.load %arg15[%c0_24, %c0_25] : memref<8x128xf32, #tpu.memory_space<vmem>>, vector<8x128xf32>
    tpu.vector_store %arg15[%c0_24, %c0_25], %51 {strides = array<i32>} : memref<8x128xf32, #tpu.memory_space<vmem>>, vector<8x128xf32>,
    %56 = vector.broadcast %23 : vector<1x128xf32> to vector<8x128xf32>
    %57 = arith.mulf %53, %56 : vector<8x128xf32>
    %58 = arith.mulf %57, %57 : vector<8x128xf32>
    %cst_26 = arith.constant dense<0.000000e+00> : vector<8xf32>
    %59 = vector.multi_reduction <add>, %58, %cst_26 [1] : vector<8x128xf32> to vector<8xf32>
    %60 = vector.shape_cast %59 : vector<8xf32> to vector<8x1xf32>
    %61 = math.sqrt %60 : vector<8x1xf32>
    %cst_27 = arith.constant 9.99999996E-13 : f32
    %62 = vector.broadcast %cst_27 : f32 to vector<8x1xf32>
    %63 = arith.maximumf %61, %62 : vector<8x1xf32>
    %64 = vector.broadcast %63 : vector<8x1xf32> to vector<8x128xf32>
    %65 = arith.divf %57, %64 : vector<8x128xf32>
    %c0_28 = arith.constant 0 : index
    %c0_29 = arith.constant 0 : index
    %c0_30 = arith.constant 0 : index
    %66 = vector.load %arg13[%c0_28, %c0_29, %c0_30] : memref<1x8x128xf32, #tpu.memory_space<vmem>>, vector<1x8x128xf32>
    %67 = vector.shape_cast %66 : vector<1x8x128xf32> to vector<8x128xf32>
    %68 = vector.shape_cast %65 : vector<8x128xf32> to vector<1x8x128xf32>
    tpu.vector_store %arg13[%c0_28, %c0_29, %c0_30], %68 {strides = array<i32>} : memref<1x8x128xf32, #tpu.memory_space<vmem>>, vector<1x8x128xf32>,
    %c0_31 = arith.constant 0 : index
    %c0_32 = arith.constant 0 : index
    %c0_33 = arith.constant 0 : index
    %69 = vector.load %arg10[%c0_31, %c0_32, %c0_33] : memref<1x1x128xf32, #tpu.memory_space<vmem>>, vector<1x1x128xf32>
    %70 = vector.shape_cast %69 : vector<1x1x128xf32> to vector<1x128xf32>
    %71 = vector.broadcast %70 : vector<1x128xf32> to vector<8x128xf32>
    %72 = arith.mulf %53, %71 : vector<8x128xf32>
    %cst_34 = arith.constant dense<0.000000e+00> : vector<8xf32>
    %73 = vector.multi_reduction <add>, %72, %cst_34 [1] : vector<8x128xf32> to vector<8xf32>
    %74 = vector.shape_cast %73 : vector<8xf32> to vector<8x1xf32>
    %c0_35 = arith.constant 0 : index
    %c0_36 = arith.constant 0 : index
    %75 = memref.load %arg11[%c0_35, %c0_36] : memref<1x1xf32, #tpu.memory_space<smem>>
    %76 = vector.broadcast %75 : f32 to vector<8x1xf32>
    %77 = arith.addf %74, %76 : vector<8x1xf32>
    %78 = tpu.iota {dimensions = array<i32: 1>} : vector<1x128xi32>
    %c32_i32_37 = arith.constant 32 : i32
    %79 = vector.broadcast %c32_i32_37 : i32 to vector<1x128xi32>
    %80 = arith.cmpi eq, %78, %79 : vector<1x128xi32>
    %81 = arith.extui %80 : vector<1x128xi1> to vector<1x128xi32>
    %82 = arith.sitofp %81 : vector<1x128xi32> to vector<1x128xf32>
    %83 = vector.broadcast %77 : vector<8x1xf32> to vector<8x128xf32>
    %84 = vector.broadcast %82 : vector<1x128xf32> to vector<8x128xf32>
    %85 = arith.mulf %83, %84 : vector<8x128xf32>
    %86 = arith.addf %14, %85 : vector<8x128xf32>
    %c0_38 = arith.constant 0 : index
    %c0_39 = arith.constant 0 : index
    %c0_40 = arith.constant 0 : index
    %87 = vector.load %arg12[%c0_38, %c0_39, %c0_40] : memref<1x8x128xf32, #tpu.memory_space<vmem>>, vector<1x8x128xf32>
    %88 = vector.shape_cast %87 : vector<1x8x128xf32> to vector<8x128xf32>
    %89 = vector.shape_cast %86 : vector<8x128xf32> to vector<1x8x128xf32>
    tpu.vector_store %arg12[%c0_38, %c0_39, %c0_40], %89 {strides = array<i32>} : memref<1x8x128xf32, #tpu.memory_space<vmem>>, vector<1x8x128xf32>,
    return
  }
  func.func @transform_0(%arg0: i32, %arg1: memref<8xi32, #tpu.memory_space<smem>>) -> (i32, i32, i32) {
    %c0_i32 = arith.constant 0 : i32
    %c0_i32_0 = arith.constant 0 : i32
    %c0_i32_1 = arith.constant 0 : i32
    return %arg0, %c0_i32, %c0_i32_0 : i32, i32, i32
  }
  func.func @transform_1(%arg0: i32, %arg1: memref<8xi32, #tpu.memory_space<smem>>) -> (i32, i32) {
    %c0_i32 = arith.constant 0 : i32
    %c0_i32_0 = arith.constant 0 : i32
    %c0_i32_1 = arith.constant 0 : i32
    return %c0_i32, %c0_i32_0 : i32, i32
  }
  func.func @transform_2(%arg0: i32, %arg1: memref<8xi32, #tpu.memory_space<smem>>) -> (i32, i32) {
    %c0_i32 = arith.constant 0 : i32
    %c0_i32_0 = arith.constant 0 : i32
    %c0_i32_1 = arith.constant 0 : i32
    return %c0_i32, %c0_i32_0 : i32, i32
  }
  func.func @transform_3(%arg0: i32, %arg1: memref<8xi32, #tpu.memory_space<smem>>) -> (i32, i32) {
    %c0_i32 = arith.constant 0 : i32
    %c0_i32_0 = arith.constant 0 : i32
    %c0_i32_1 = arith.constant 0 : i32
    return %c0_i32, %c0_i32_0 : i32, i32
  }
  func.func @transform_4(%arg0: i32, %arg1: memref<8xi32, #tpu.memory_space<smem>>) -> (i32, i32) {
    %c0_i32 = arith.constant 0 : i32
    %c0_i32_0 = arith.constant 0 : i32
    %c0_i32_1 = arith.constant 0 : i32
    return %c0_i32, %c0_i32_0 : i32, i32
  }
  func.func @transform_5(%arg0: i32, %arg1: memref<8xi32, #tpu.memory_space<smem>>) -> (i32, i32) {
    %c0_i32 = arith.constant 0 : i32
    %c0_i32_0 = arith.constant 0 : i32
    %c0_i32_1 = arith.constant 0 : i32
    return %c0_i32, %c0_i32_0 : i32, i32
  }
  func.func @transform_6(%arg0: i32, %arg1: memref<8xi32, #tpu.memory_space<smem>>) -> (i32, i32) {
    %c0_i32 = arith.constant 0 : i32
    %c0_i32_0 = arith.constant 0 : i32
    %c0_i32_1 = arith.constant 0 : i32
    return %c0_i32, %c0_i32_0 : i32, i32
  }
  func.func @transform_7(%arg0: i32, %arg1: memref<8xi32, #tpu.memory_space<smem>>) -> (i32, i32) {
    %c0_i32 = arith.constant 0 : i32
    %c0_i32_0 = arith.constant 0 : i32
    %c0_i32_1 = arith.constant 0 : i32
    return %c0_i32, %c0_i32_0 : i32, i32
  }
  func.func @transform_8(%arg0: i32, %arg1: memref<8xi32, #tpu.memory_space<smem>>) -> (i32, i32, i32) {
    %0 = arith.index_cast %arg0 : i32 to index
    %1 = memref.load %arg1[%0] : memref<8xi32, #tpu.memory_space<smem>>
    %c0_i32 = arith.constant 0 : i32
    %c0_i32_0 = arith.constant 0 : i32
    %c0_i32_1 = arith.constant 0 : i32
    return %1, %c0_i32, %c0_i32_0 : i32, i32, i32
  }
  func.func @transform_9(%arg0: i32, %arg1: memref<8xi32, #tpu.memory_space<smem>>) -> (i32, i32) {
    %c0_i32 = arith.constant 0 : i32
    %c0_i32_0 = arith.constant 0 : i32
    %c0_i32_1 = arith.constant 0 : i32
    return %c0_i32, %c0_i32_0 : i32, i32
  }
  func.func @transform_10(%arg0: i32, %arg1: memref<8xi32, #tpu.memory_space<smem>>) -> (i32, i32, i32) {
    %c0_i32 = arith.constant 0 : i32
    %c0_i32_0 = arith.constant 0 : i32
    %c0_i32_1 = arith.constant 0 : i32
    return %arg0, %c0_i32, %c0_i32_0 : i32, i32, i32
  }
  func.func @transform_11(%arg0: i32, %arg1: memref<8xi32, #tpu.memory_space<smem>>) -> (i32, i32, i32) {
    %c0_i32 = arith.constant 0 : i32
    %c0_i32_0 = arith.constant 0 : i32
    %c0_i32_1 = arith.constant 0 : i32
    return %arg0, %c0_i32, %c0_i32_0 : i32, i32, i32
  }
  func.func @transform_12(%arg0: i32, %arg1: memref<8xi32, #tpu.memory_space<smem>>) -> (i32, i32) {
    %c0_i32 = arith.constant 0 : i32
    %c0_i32_0 = arith.constant 0 : i32
    %c0_i32_1 = arith.constant 0 : i32
    return %c0_i32, %c0_i32_0 : i32, i32
  }
  func.func @transform_13(%arg0: i32, %arg1: memref<8xi32, #tpu.memory_space<smem>>) -> (i32, i32) {
    %c0_i32 = arith.constant 0 : i32
    %c0_i32_0 = arith.constant 0 : i32
    %c0_i32_1 = arith.constant 0 : i32
    return %c0_i32, %c0_i32_0 : i32, i32
  }
}

</mosaic_0001>

<llo_original>
// kernel: manager_dlstm_forward_seq.1
$region0: #{manager_dlstm_forward_seq.1}
  #allocation0 [shape = 'u32[]', space=smem, size = 0x4, offset = 0x4, fixed_abs, tag = 'smem constant byte address 0x4 - core index']
  #allocation1 [shape = 'u32[144,128]{1,0:T(1,128)}', space=vmem, size = 0x12000, scoped, tag = 'internal scratch']
  #allocation2 [shape = 's32[1]{0}', space=sflag, size = 0x4, scoped, tag = 'scoped memory for manager_dlstm_forward_seq.1']
  #allocation3 [shape = 'u8[512]{0}', space=smem, size = 0x200, scoped, tag = 'prefetched SMEM operand 0']
  #allocation4 [shape = 'f32[1,1]{1,0:T(1,128)S(6)}', space=smem, size = 0x200, scoped, tag = 'scoped memory for manager_dlstm_forward_seq.1']
  %s0 = inlined_call_operand.vmem [shape: s32[8], index: 0, kind: input, shape index: {}]
  %s1 = inlined_call_operand.vmem [shape: f32[8,8,32], index: 1, kind: input, shape index: {}]
  %s2 = inlined_call_operand.vmem [shape: f32[8,128], index: 2, kind: input, shape index: {}]
  %s3 = inlined_call_operand.vmem [shape: f32[8,128], index: 3, kind: input, shape index: {}]
  %s4 = inlined_call_operand.vmem [shape: f32[32,128], index: 4, kind: input, shape index: {}]
  %s5 = inlined_call_operand.vmem [shape: f32[1,128], index: 5, kind: input, shape index: {}]
  %s6 = inlined_call_operand.vmem [shape: f32[128,512], index: 6, kind: input, shape index: {}]
  %s7 = inlined_call_operand.vmem [shape: f32[1,512], index: 7, kind: input, shape index: {}]
  %s8 = inlined_call_operand.vmem [shape: f32[128,512], index: 8, kind: input, shape index: {}]
  %s9 = inlined_call_operand.vmem [shape: f32[4,1,128], index: 9, kind: input, shape index: {}]
  %s10 = inlined_call_operand.<no memory space> [shape: f32[1,1], index: 10, kind: input, shape index: {}]
  %s11 = inlined_call_operand.vmem [shape: f32[8,8,128], index: 11, kind: output, shape index: {0}]
  %s12 = inlined_call_operand.hbm [shape: f32[8,8,128], index: 12, kind: output, shape index: {1}]
  %s13 = inlined_call_operand.hbm [shape: f32[8,128], index: 13, kind: output, shape index: {2}]
  %s14 = inlined_call_operand.hbm [shape: f32[8,128], index: 14, kind: output, shape index: {3}]
  %15 = xla_tuple %s11, %s12, %s13, %s14
  %s16 = sld [smem:[#allocation0]]
  $region101: #{manager_dlstm_forward_seq.1} parent=0
    _
  %s18 = ssub.s32 1, %s16
  %s19 = scalar_select 0, %s18, %s16
  %s20 = sshll.u32 %s0, 4
  %s21 = int_to_ptr.vmem [resolvable:$true] %s20
  %23 = dma.vmem_to_smem %s21, 16, [#allocation3], [#allocation2]
  %24 = sst [smem:[#allocation4]] %s10
  %25 = dma.done [#allocation2], 16
  %26 = sfence
  $region1: #{manager_dlstm_forward_seq.1} parent=0
    #allocation5 [shape = 'u8[8192]{0}', space=vmem, size = 0x2000, scoped, tag = 'output window, operand 1']
    #allocation6 [shape = 's32[2]{0}', space=sflag, size = 0x8, scoped, tag = 'scoped memory for manager_dlstm_forward_seq.1']
    #allocation7 [shape = 'u8[4096]{0}', space=vmem, size = 0x1000, scoped, tag = 'output window, operand 2, single buffered']
    #allocation8 [shape = 's32[1]{0}', space=sflag, size = 0x4, scoped, tag = 'scoped memory for manager_dlstm_forward_seq.1']
    #allocation9 [shape = 'u8[4096]{0}', space=vmem, size = 0x1000, scoped, tag = 'output window, operand 3, single buffered']
    %27 = vsyncpa [#allocation6], 0
    %s28 = scalar_lea.sflag [#allocation6], 1
    %29 = vsyncpa %s28, 0
    %30 = vsyncpa [#allocation8], 0
    loop: start=0, step=1, limit=10
    $region2: #{manager_dlstm_forward_seq.1} parent=1 // loop_pre_header
      _
    $region3: #{manager_dlstm_forward_seq.1} parent=1 // loop_header
      %s32 = sphi 0, %s36
      %p33 = scmp.ge.s32.totalorder %s32, 10
      %s42 = sphi 0, %s44
      %s45 = sphi 0, %s42
      %s46 = sphi 0, %s45
      %s62 = sphi 0, %s46
      %s66 = sphi 0, %s66
      %s68 = sphi 0, %s66
      %s69 = sphi 0, %s68
      %s83 = sphi 0, %s69
      %s87 = sphi 0, %s87
      %s89 = sphi 0, %s87
      %s90 = sphi 0, %s89
      %s104 = sphi 0, %s90
      %s108 = sphi 0, %s108
      %s110 = sphi 0, %s108
      %s111 = sphi 0, %s110
      %s125 = sphi 0, %s111
      %s129 = sphi 0, %s129
      %s131 = sphi 0, %s129
      %s132 = sphi 0, %s131
      %s146 = sphi 0, %s132
      %s150 = sphi 0, %s150
      %s152 = sphi 0, %s150
      %s153 = sphi 0, %s152
      %s167 = sphi 0, %s153
      %s171 = sphi 0, %s171
      %s173 = sphi 0, %s171
      %s174 = sphi 0, %s173
      %s188 = sphi 0, %s174
      %s192 = sphi 0, %s192
      %s194 = sphi 0, %s192
      %s195 = sphi 0, %s194
      %s209 = sphi 0, %s195
      %s217 = sphi 0, %s219
      %s220 = sphi 0, %s217
      %s221 = sphi 0, %s220
      %s237 = sphi 0, %s221
      %s241 = sphi 0, %s241
      %s243 = sphi 0, %s241
      %s244 = sphi 0, %s243
      %s258 = sphi 0, %s244
      %s264 = sphi 0, %s266
      %s267 = sphi 0, %s264
      %s268 = sphi 0, %s267
      %s284 = sphi 0, %s268
      %s290 = sphi 0, %s292
      %s293 = sphi 0, %s290
      %s294 = sphi 0, %s293
      %s310 = sphi 0, %s294
      %s314 = sphi 0, %s314
      %s316 = sphi 0, %s314
      %s317 = sphi 0, %s316
      %s331 = sphi 0, %s317
      %s335 = sphi 0, %s335
      %s337 = sphi 0, %s335
      %s338 = sphi 0, %s337
      %s352 = sphi 0, %s338
    $region4: #{manager_dlstm_forward_seq.1} parent=1 // loop_header_branch
      %35 = sbr.rel (%p33) target = $region8
    $region5: #{manager_dlstm_forward_seq.1} parent=1 // loop_body
      %s37 = ssub.s32 %s32, 1
      %s38 = ssub.s32 %s32, 2
      %s39 = sadd.s32 %s32, 1
      %s40 = ssub.s32 %s32, %s39
      %p41 = scmp.eq.s32.totalorder %s40, 0
      %s43 = sadd.s32 %s42, 1
      %s44 = scalar_select %p41, %s42, %s43
      %p47 = pneg %p41
      %p48 = scmp.eq.s32.totalorder %s32, 7
      %p49 = por %p47, %p48
      %p50 = scmp.ne.s32.totalorder %s42, %s45
      %p51 = scmp.eq.s32.totalorder %s32, 0
      %p52 = por %p50, %p51
      %p53 = scmp.ne.s32.totalorder %s42, %s45
      %p54 = scmp.eq.s32.totalorder %s37, 7
      %p55 = por %p53, %p54
      %p56 = scmp.ne.s32.totalorder %s45, %s46
      %p57 = scmp.eq.s32.totalorder %s37, 0
      %p58 = por %p56, %p57
      %p59 = scmp.ne.s32.totalorder %s45, %s46
      %p60 = scmp.eq.s32.totalorder %s38, 7
      %p61 = por %p59, %p60
      %p63 = scmp.ne.s32.totalorder %s46, %s62
      %p64 = scmp.eq.s32.totalorder %s38, 0
      %p65 = por %p63, %p64
      %s67 = sadd.s32 %s66, 1
      %p70 = scmp.eq.s32.totalorder %s32, 7
      %p71 = scmp.ne.s32.totalorder %s66, %s68
      %p72 = scmp.eq.s32.totalorder %s32, 0
      %p73 = por %p71, %p72
      %p74 = scmp.ne.s32.totalorder %s66, %s68
      %p75 = scmp.eq.s32.totalorder %s37, 7
      %p76 = por %p74, %p75
      %p77 = scmp.ne.s32.totalorder %s68, %s69
      %p78 = scmp.eq.s32.totalorder %s37, 0
      %p79 = por %p77, %p78
      %p80 = scmp.ne.s32.totalorder %s68, %s69
      %p81 = scmp.eq.s32.totalorder %s38, 7
      %p82 = por %p80, %p81
      %p84 = scmp.ne.s32.totalorder %s69, %s83
      %p85 = scmp.eq.s32.totalorder %s38, 0
      %p86 = por %p84, %p85
      %s88 = sadd.s32 %s87, 1
      %p91 = scmp.eq.s32.totalorder %s32, 7
      %p92 = scmp.ne.s32.totalorder %s87, %s89
      %p93 = scmp.eq.s32.totalorder %s32, 0
      %p94 = por %p92, %p93
      %p95 = scmp.ne.s32.totalorder %s87, %s89
      %p96 = scmp.eq.s32.totalorder %s37, 7
      %p97 = por %p95, %p96
      %p98 = scmp.ne.s32.totalorder %s89, %s90
      %p99 = scmp.eq.s32.totalorder %s37, 0
      %p100 = por %p98, %p99
      %p101 = scmp.ne.s32.totalorder %s89, %s90
      %p102 = scmp.eq.s32.totalorder %s38, 7
      %p103 = por %p101, %p102
      %p105 = scmp.ne.s32.totalorder %s90, %s104
      %p106 = scmp.eq.s32.totalorder %s38, 0
      %p107 = por %p105, %p106
      %s109 = sadd.s32 %s108, 1
      %p112 = scmp.eq.s32.totalorder %s32, 7
      %p113 = scmp.ne.s32.totalorder %s108, %s110
      %p114 = scmp.eq.s32.totalorder %s32, 0
      %p115 = por %p113, %p114
      %p116 = scmp.ne.s32.totalorder %s108, %s110
      %p117 = scmp.eq.s32.totalorder %s37, 7
      %p118 = por %p116, %p117
      %p119 = scmp.ne.s32.totalorder %s110, %s111
      %p120 = scmp.eq.s32.totalorder %s37, 0
      %p121 = por %p119, %p120
      %p122 = scmp.ne.s32.totalorder %s110, %s111
      %p123 = scmp.eq.s32.totalorder %s38, 7
      %p124 = por %p122, %p123
      %p126 = scmp.ne.s32.totalorder %s111, %s125
      %p127 = scmp.eq.s32.totalorder %s38, 0
      %p128 = por %p126, %p127
      %s130 = sadd.s32 %s129, 1
      %p133 = scmp.eq.s32.totalorder %s32, 7
      %p134 = scmp.ne.s32.totalorder %s129, %s131
      %p135 = scmp.eq.s32.totalorder %s32, 0
      %p136 = por %p134, %p135
      %p137 = scmp.ne.s32.totalorder %s129, %s131
      %p138 = scmp.eq.s32.totalorder %s37, 7
      %p139 = por %p137, %p138
      %p140 = scmp.ne.s32.totalorder %s131, %s132
      %p141 = scmp.eq.s32.totalorder %s37, 0
      %p142 = por %p140, %p141
      %p143 = scmp.ne.s32.totalorder %s131, %s132
      %p144 = scmp.eq.s32.totalorder %s38, 7
      %p145 = por %p143, %p144
      %p147 = scmp.ne.s32.totalorder %s132, %s146
      %p148 = scmp.eq.s32.totalorder %s38, 0
      %p149 = por %p147, %p148
      %s151 = sadd.s32 %s150, 1
      %p154 = scmp.eq.s32.totalorder %s32, 7
      %p155 = scmp.ne.s32.totalorder %s150, %s152
      %p156 = scmp.eq.s32.totalorder %s32, 0
      %p157 = por %p155, %p156
      %p158 = scmp.ne.s32.totalorder %s150, %s152
      %p159 = scmp.eq.s32.totalorder %s37, 7
      %p160 = por %p158, %p159
      %p161 = scmp.ne.s32.totalorder %s152, %s153
      %p162 = scmp.eq.s32.totalorder %s37, 0
      %p163 = por %p161, %p162
      %p164 = scmp.ne.s32.totalorder %s152, %s153
      %p165 = scmp.eq.s32.totalorder %s38, 7
      %p166 = por %p164, %p165
      %p168 = scmp.ne.s32.totalorder %s153, %s167
      %p169 = scmp.eq.s32.totalorder %s38, 0
      %p170 = por %p168, %p169
      %s172 = sadd.s32 %s171, 1
      %p175 = scmp.eq.s32.totalorder %s32, 7
      %p176 = scmp.ne.s32.totalorder %s171, %s173
      %p177 = scmp.eq.s32.totalorder %s32, 0
      %p178 = por %p176, %p177
      %p179 = scmp.ne.s32.totalorder %s171, %s173
      %p180 = scmp.eq.s32.totalorder %s37, 7
      %p181 = por %p179, %p180
      %p182 = scmp.ne.s32.totalorder %s173, %s174
      %p183 = scmp.eq.s32.totalorder %s37, 0
      %p184 = por %p182, %p183
      %p185 = scmp.ne.s32.totalorder %s173, %s174
      %p186 = scmp.eq.s32.totalorder %s38, 7
      %p187 = por %p185, %p186
      %p189 = scmp.ne.s32.totalorder %s174, %s188
      %p190 = scmp.eq.s32.totalorder %s38, 0
      %p191 = por %p189, %p190
      %s193 = sadd.s32 %s192, 1
      %p196 = scmp.eq.s32.totalorder %s32, 7
      %p197 = scmp.ne.s32.totalorder %s192, %s194
      %p198 = scmp.eq.s32.totalorder %s32, 0
      %p199 = por %p197, %p198
      %p200 = scmp.ne.s32.totalorder %s192, %s194
      %p201 = scmp.eq.s32.totalorder %s37, 7
      %p202 = por %p200, %p201
      %p203 = scmp.ne.s32.totalorder %s194, %s195
      %p204 = scmp.eq.s32.totalorder %s37, 0
      %p205 = por %p203, %p204
      %p206 = scmp.ne.s32.totalorder %s194, %s195
      %p207 = scmp.eq.s32.totalorder %s38, 7
      %p208 = por %p206, %p207
      %p210 = scmp.ne.s32.totalorder %s195, %s209
      %p211 = scmp.eq.s32.totalorder %s38, 0
      %p212 = por %p210, %p211
      %s213 = sld [smem:[#allocation3 + %s32]]
      %s214 = sld [smem:[#allocation3 + %s39]]
      %s215 = ssub.s32 %s213, %s214
      %p216 = scmp.eq.s32.totalorder %s215, 0
      %s218 = sadd.s32 %s217, 1
      %s219 = scalar_select %p216, %s217, %s218
      %p222 = pneg %p216
      %p223 = scmp.eq.s32.totalorder %s32, 7
      %p224 = por %p222, %p223
      %p225 = scmp.ne.s32.totalorder %s217, %s220
      %p226 = scmp.eq.s32.totalorder %s32, 0
      %p227 = por %p225, %p226
      %p228 = scmp.ne.s32.totalorder %s217, %s220
      %p229 = scmp.eq.s32.totalorder %s37, 7
      %p230 = por %p228, %p229
      %p231 = scmp.ne.s32.totalorder %s220, %s221
      %p232 = scmp.eq.s32.totalorder %s37, 0
      %p233 = por %p231, %p232
      %p234 = scmp.ne.s32.totalorder %s220, %s221
      %p235 = scmp.eq.s32.totalorder %s38, 7
      %p236 = por %p234, %p235
      %p238 = scmp.ne.s32.totalorder %s221, %s237
      %p239 = scmp.eq.s32.totalorder %s38, 0
      %p240 = por %p238, %p239
      %s242 = sadd.s32 %s241, 1
      %p245 = scmp.eq.s32.totalorder %s32, 7
      %p246 = scmp.ne.s32.totalorder %s241, %s243
      %p247 = scmp.eq.s32.totalorder %s32, 0
      %p248 = por %p246, %p247
      %p249 = scmp.ne.s32.totalorder %s241, %s243
      %p250 = scmp.eq.s32.totalorder %s37, 7
      %p251 = por %p249, %p250
      %p252 = scmp.ne.s32.totalorder %s243, %s244
      %p253 = scmp.eq.s32.totalorder %s37, 0
      %p254 = por %p252, %p253
      %p255 = scmp.ne.s32.totalorder %s243, %s244
      %p256 = scmp.eq.s32.totalorder %s38, 7
      %p257 = por %p255, %p256
      %p259 = scmp.ne.s32.totalorder %s244, %s258
      %p260 = scmp.eq.s32.totalorder %s38, 0
      %p261 = por %p259, %p260
      %s262 = ssub.s32 %s32, %s39
      %p263 = scmp.eq.s32.totalorder %s262, 0
      %s265 = sadd.s32 %s264, 1
      %s266 = scalar_select %p263, %s264, %s265
      %p269 = pneg %p263
      %p270 = scmp.eq.s32.totalorder %s32, 7
      %p271 = por %p269, %p270
      %p272 = scmp.ne.s32.totalorder %s264, %s267
      %p273 = scmp.eq.s32.totalorder %s32, 0
      %p274 = por %p272, %p273
      %p275 = scmp.ne.s32.totalorder %s264, %s267
      %p276 = scmp.eq.s32.totalorder %s37, 7
      %p277 = por %p275, %p276
      %p278 = scmp.ne.s32.totalorder %s267, %s268
      %p279 = scmp.eq.s32.totalorder %s37, 0
      %p280 = por %p278, %p279
      %p281 = scmp.ne.s32.totalorder %s267, %s268
      %p282 = scmp.eq.s32.totalorder %s38, 7
      %p283 = por %p281, %p282
      %p285 = scmp.ne.s32.totalorder %s268, %s284
      %p286 = scmp.eq.s32.totalorder %s38, 0
      %p287 = por %p285, %p286
      %s288 = ssub.s32 %s32, %s39
      %p289 = scmp.eq.s32.totalorder %s288, 0
      %s291 = sadd.s32 %s290, 1
      %s292 = scalar_select %p289, %s290, %s291
      %p295 = pneg %p289
      %p296 = scmp.eq.s32.totalorder %s32, 7
      %p297 = por %p295, %p296
      %p298 = scmp.ne.s32.totalorder %s290, %s293
      %p299 = scmp.eq.s32.totalorder %s32, 0
      %p300 = por %p298, %p299
      %p301 = scmp.ne.s32.totalorder %s290, %s293
      %p302 = scmp.eq.s32.totalorder %s37, 7
      %p303 = por %p301, %p302
      %p304 = scmp.ne.s32.totalorder %s293, %s294
      %p305 = scmp.eq.s32.totalorder %s37, 0
      %p306 = por %p304, %p305
      %p307 = scmp.ne.s32.totalorder %s293, %s294
      %p308 = scmp.eq.s32.totalorder %s38, 7
      %p309 = por %p307, %p308
      %p311 = scmp.ne.s32.totalorder %s294, %s310
      %p312 = scmp.eq.s32.totalorder %s38, 0
      %p313 = por %p311, %p312
      %s315 = sadd.s32 %s314, 1
      %p318 = scmp.eq.s32.totalorder %s32, 7
      %p319 = scmp.ne.s32.totalorder %s314, %s316
      %p320 = scmp.eq.s32.totalorder %s32, 0
      %p321 = por %p319, %p320
      %p322 = scmp.ne.s32.totalorder %s314, %s316
      %p323 = scmp.eq.s32.totalorder %s37, 7
      %p324 = por %p322, %p323
      %p325 = scmp.ne.s32.totalorder %s316, %s317
      %p326 = scmp.eq.s32.totalorder %s37, 0
      %p327 = por %p325, %p326
      %p328 = scmp.ne.s32.totalorder %s316, %s317
      %p329 = scmp.eq.s32.totalorder %s38, 7
      %p330 = por %p328, %p329
      %p332 = scmp.ne.s32.totalorder %s317, %s331
      %p333 = scmp.eq.s32.totalorder %s38, 0
      %p334 = por %p332, %p333
      %s336 = sadd.s32 %s335, 1
      %p339 = scmp.eq.s32.totalorder %s32, 7
      %p340 = scmp.ne.s32.totalorder %s335, %s337
      %p341 = scmp.eq.s32.totalorder %s32, 0
      %p342 = por %p340, %p341
      %p343 = scmp.ne.s32.totalorder %s335, %s337
      %p344 = scmp.eq.s32.totalorder %s37, 7
      %p345 = por %p343, %p344
      %p346 = scmp.ne.s32.totalorder %s337, %s338
      %p347 = scmp.eq.s32.totalorder %s37, 0
      %p348 = por %p346, %p347
      %p349 = scmp.ne.s32.totalorder %s337, %s338
      %p350 = scmp.eq.s32.totalorder %s38, 7
      %p351 = por %p349, %p350
      %p353 = scmp.ne.s32.totalorder %s338, %s352
      %p354 = scmp.eq.s32.totalorder %s38, 0
      %p355 = por %p353, %p354
      %p356 = scmp.le.s32.totalorder 1, %s32
      %p357 = scmp.lt.s32.totalorder %s32, 9
      %p358 = pnand %p356, %p357
      %p359 = pneg %p358
      // Predicated region
      $region9: #{manager_dlstm_forward_seq.1} parent=5 // pred_check
        _
      $region10: #{manager_dlstm_forward_seq.1} parent=5 // pred_check_branch
        %361 = sbr.rel (%p358) target = $region12
      $region11: #{manager_dlstm_forward_seq.1} parent=5 // pred_region
        %s362 = ssub.s32 %s32, 1
        // Predicated region
        $region13: #{manager_dlstm_forward_seq.1} parent=11 // pred_check
          %p363 = pneg %p79
        $region14: #{manager_dlstm_forward_seq.1} parent=11 // pred_check_branch
          %365 = sbr.rel (%p363) target = $region16
        $region15: #{manager_dlstm_forward_seq.1} parent=11 // pred_region
          _
        $region16: #{manager_dlstm_forward_seq.1} parent=11 // pred_fallthru
          _
        // Predicated region
        $region17: #{manager_dlstm_forward_seq.1} parent=11 // pred_check
          %p366 = pneg %p100
        $region18: #{manager_dlstm_forward_seq.1} parent=11 // pred_check_branch
          %368 = sbr.rel (%p366) target = $region20
        $region19: #{manager_dlstm_forward_seq.1} parent=11 // pred_region
          _
        $region20: #{manager_dlstm_forward_seq.1} parent=11 // pred_fallthru
          _
        // Predicated region
        $region21: #{manager_dlstm_forward_seq.1} parent=11 // pred_check
          %p369 = pneg %p121
        $region22: #{manager_dlstm_forward_seq.1} parent=11 // pred_check_branch
          %371 = sbr.rel (%p369) target = $region24
        $region23: #{manager_dlstm_forward_seq.1} parent=11 // pred_region
          _
        $region24: #{manager_dlstm_forward_seq.1} parent=11 // pred_fallthru
          _
        // Predicated region
        $region25: #{manager_dlstm_forward_seq.1} parent=11 // pred_check
          %p372 = pneg %p142
        $region26: #{manager_dlstm_forward_seq.1} parent=11 // pred_check_branch
          %374 = sbr.rel (%p372) target = $region28
        $region27: #{manager_dlstm_forward_seq.1} parent=11 // pred_region
          _
        $region28: #{manager_dlstm_forward_seq.1} parent=11 // pred_fallthru
          _
        // Predicated region
        $region29: #{manager_dlstm_forward_seq.1} parent=11 // pred_check
          %p375 = pneg %p163
        $region30: #{manager_dlstm_forward_seq.1} parent=11 // pred_check_branch
          %377 = sbr.rel (%p375) target = $region32
        $region31: #{manager_dlstm_forward_seq.1} parent=11 // pred_region
          _
        $region32: #{manager_dlstm_forward_seq.1} parent=11 // pred_fallthru
          _
        // Predicated region
        $region33: #{manager_dlstm_forward_seq.1} parent=11 // pred_check
          %p378 = pneg %p184
        $region34: #{manager_dlstm_forward_seq.1} parent=11 // pred_check_branch
          %380 = sbr.rel (%p378) target = $region36
        $region35: #{manager_dlstm_forward_seq.1} parent=11 // pred_region
          _
        $region36: #{manager_dlstm_forward_seq.1} parent=11 // pred_fallthru
          _
        // Predicated region
        $region37: #{manager_dlstm_forward_seq.1} parent=11 // pred_check
          %p381 = pneg %p205
        $region38: #{manager_dlstm_forward_seq.1} parent=11 // pred_check_branch
          %383 = sbr.rel (%p381) target = $region40
        $region39: #{manager_dlstm_forward_seq.1} parent=11 // pred_region
          _
        $region40: #{manager_dlstm_forward_seq.1} parent=11 // pred_fallthru
          _
        // Predicated region
        $region41: #{manager_dlstm_forward_seq.1} parent=11 // pred_check
          %p384 = pneg %p254
        $region42: #{manager_dlstm_forward_seq.1} parent=11 // pred_check_branch
          %386 = sbr.rel (%p384) target = $region44
        $region43: #{manager_dlstm_forward_seq.1} parent=11 // pred_region
          _
        $region44: #{manager_dlstm_forward_seq.1} parent=11 // pred_fallthru
          _
      $region12: #{manager_dlstm_forward_seq.1} parent=5 // pred_fallthru
        _
      %p387 = scmp.lt.s32.totalorder %s32, 8
      // Predicated region
      $region45: #{manager_dlstm_forward_seq.1} parent=5 // pred_check
        %p388 = pneg %p387
      $region46: #{manager_dlstm_forward_seq.1} parent=5 // pred_check_branch
        %390 = sbr.rel (%p388) target = $region48
      $region47: #{manager_dlstm_forward_seq.1} parent=5 // pred_region
        // Predicated region
        $region49: #{manager_dlstm_forward_seq.1} parent=47 // pred_check
          %p391 = pneg %p52
        $region50: #{manager_dlstm_forward_seq.1} parent=47 // pred_check_branch
          %393 = sbr.rel (%p391) target = $region52
        $region51: #{manager_dlstm_forward_seq.1} parent=47 // pred_region
          %p394 = scmp.lt.s32.totalorder %s32, 7
          %s395 = scalar_select %p394, %s32, 7
          %s396 = smul.addr %s395, 8
          %s397 = scalar_lea.vmem %s1, %s396
        $region52: #{manager_dlstm_forward_seq.1} parent=47 // pred_fallthru
          _
        // Predicated region
        $region53: #{manager_dlstm_forward_seq.1} parent=47 // pred_check
          %p398 = pneg %p227
        $region54: #{manager_dlstm_forward_seq.1} parent=47 // pred_check_branch
          %400 = sbr.rel (%p398) target = $region56
        $region55: #{manager_dlstm_forward_seq.1} parent=47 // pred_region
          %s401 = sld [smem:[#allocation3 + %s32]]
          %p402 = scmp.lt.s32.totalorder %s401, 3
          %s403 = scalar_select %p402, %s401, 3
          %s404 = scalar_lea.vmem %s9, %s403
          %s405 = sld [smem:[#allocation3 + %s32]]
        $region56: #{manager_dlstm_forward_seq.1} parent=47 // pred_fallthru
          _
      $region48: #{manager_dlstm_forward_seq.1} parent=5 // pred_fallthru
        _
      %p406 = scmp.le.s32.totalorder 1, %s32
      %p407 = scmp.lt.s32.totalorder %s32, 9
      %p408 = pnand %p406, %p407
      %p409 = pneg %p408
      // Predicated region
      $region57: #{manager_dlstm_forward_seq.1} parent=5 // pred_check
        _
      $region58: #{manager_dlstm_forward_seq.1} parent=5 // pred_check_branch
        %411 = sbr.rel (%p408) target = $region60
      $region59: #{manager_dlstm_forward_seq.1} parent=5 // pred_region
        %s412 = ssub.s32 %s32, 1
        %p413 = scmp.lt.s32.totalorder %s37, 7
        %s414 = scalar_select %p413, %s37, 7
        %s415 = smul.addr %s414, 8
        %s416 = scalar_lea.vmem %s1, %s415
        %p417 = pneg %p58
        %p418 = pneg %p55
        %p419 = pneg %p79
        %p420 = pneg %p76
        %p421 = pneg %p100
        %p422 = pneg %p97
        %p423 = pneg %p121
        %p424 = pneg %p118
        %p425 = pneg %p142
        %p426 = pneg %p139
        %p427 = pneg %p163
        %p428 = pneg %p160
        %p429 = pneg %p184
        %p430 = pneg %p181
        %p431 = pneg %p205
        %p432 = pneg %p202
        %s433 = sld [smem:[#allocation3 + %s37]]
        %p434 = scmp.lt.s32.totalorder %s433, 3
        %s435 = scalar_select %p434, %s433, 3
        %s436 = scalar_lea.vmem %s9, %s435
        %p437 = pneg %p233
        %p438 = pneg %p230
        %p439 = pneg %p254
        %p440 = pneg %p251
        %p441 = pneg %p280
        %p442 = pneg %p277
        %p443 = scmp.lt.s32.totalorder %s37, 7
        %s444 = scalar_select %p443, %s37, 7
        %s445 = smul.addr %s444, 8
        %s446 = scalar_lea.vmem %s11, %s445
        %p447 = pneg %p306
        %p448 = pneg %p303
        %s449 = sand.u32 %s293, 1
        %s450 = scalar_lea.sflag [#allocation6], %s449
        %s451 = sand.u32 %s293, 1
        %s452 = smul.addr %s451, 8
        %s453 = scalar_lea.vmem [#allocation5], %s452
        %p454 = pneg %p327
        %p455 = pneg %p324
        %p456 = pneg %p348
        %p457 = pneg %p345
        %p458 = scmp.lt.s32.totalorder %s37, 7
        %s459 = scalar_select %p458, %s37, 7
        %s460 = smul.addr %s459, 8
        %s461 = scalar_lea.vmem %s1, %s460
        %s462 = sld [smem:[#allocation3 + %s37]]
        %p463 = scmp.lt.s32.totalorder %s462, 3
        %s464 = scalar_select %p463, %s462, 3
        %s465 = scalar_lea.vmem %s9, %s464
        %s466 = sld [smem:[#allocation3 + %s37]]
        %p467 = scmp.lt.s32.totalorder %s37, 7
        %s468 = scalar_select %p467, %s37, 7
        %s469 = smul.addr %s468, 8
        %s470 = scalar_lea.vmem %s11, %s469
        %p471 = scmp.eq.s32.totalorder %s37, 0
        // Predicated region
        $region61: #{manager_dlstm_forward_seq.1} parent=59 // pred_check
          %p472 = pneg %p471
        $region62: #{manager_dlstm_forward_seq.1} parent=59 // pred_check_branch
          %474 = sbr.rel (%p472) target = $region64
        $region63: #{manager_dlstm_forward_seq.1} parent=59 // pred_region
          %v475 = vld [vmem:[%s2] sm:$0xff]
          %476 = vst [vmem:[#allocation7] sm:$0xff] %v475
          %v477 = vld [vmem:[%s3] sm:$0xff]
          %478 = vst [vmem:[#allocation9] sm:$0xff] %v477
        $region64: #{manager_dlstm_forward_seq.1} parent=59 // pred_fallthru
          _
        %s479 = sld [smem:[#allocation3 + %s37]]
        %s480 = smul.u32 %s479, 32
        %v481 = vld [vmem:[%s461] sm:$0xff]
        %v482 = vld [vmem:[%s4] sm:$0xff]
        %v483 = vld [vmem:[%s4 + $0x8] sm:$0xff]
        %v484 = vld [vmem:[%s4 + $0x10] sm:$0xff]
        %v485 = vld [vmem:[%s4 + $0x18] sm:$0xff]
        %v486 = vld [vmem:[%s5] sm:$0x1]
        %v488 = vlaneseq
        %v489 = vshrl.u32 %v488, 7
        %v490 = vsub.s32 0, %v489
        %v491 = vrot.slane %v486, %v490
        %vm493 = vcmask 261120
        %v495 = vsel %vm493, %v481, 0
        %497 = vmatprep.subr.mxu0 0.0
        %498 = vmatpush1.msra.mxu0 %v482
        %499 = vmatprep.subr.mxu0 0.0
        %500 = vmatpush1.msra.mxu0 %v483
        %501 = vmatprep.subr.mxu0 0.0
        %502 = vmatpush1.msra.mxu0 %v484
        %503 = vmatprep.subr.mxu0 0.0
        %504 = vmatpush1.msra.mxu0 %v485
        %505 = vmatprep.subr.mxu0 0.0
        %506 = vmatpush1.msra.mxu0 0.0
        %507 = vmatprep.subr.mxu0 0.0
        %508 = vmatpush1.msra.mxu0 0.0
        %509 = vmatprep.subr.mxu0 0.0
        %510 = vmatpush1.msra.mxu0 0.0
        %511 = vmatprep.subr.mxu0 0.0
        %512 = vmatpush1.msra.mxu0 0.0
        %513 = vmatprep.subr.mxu0 0.0
        %514 = vmatpush1.msra.mxu0 0.0
        %515 = vmatprep.subr.mxu0 0.0
        %516 = vmatpush1.msra.mxu0 0.0
        %517 = vmatprep.subr.mxu0 0.0
        %518 = vmatpush1.msra.mxu0 0.0
        %519 = vmatprep.subr.mxu0 0.0
        %520 = vmatpush1.msra.mxu0 0.0
        %521 = vmatprep.subr.mxu0 0.0
        %522 = vmatpush1.msra.mxu0 0.0
        %523 = vmatprep.subr.mxu0 0.0
        %524 = vmatpush1.msra.mxu0 0.0
        %525 = vmatprep.subr.mxu0 0.0
        %526 = vmatpush1.msra.mxu0 0.0
        %527 = vmatprep.subr.mxu0 0.0
        %528 = vmatpush1.msra.mxu0 0.0
        %529 = vmatprep.subr.mxu0 0.0
        %530 = vmatpush1.msra.mxu0 0.0
        %531 = vmatprep.subr.mxu0 0.0
        %532 = vmatpush1.msra.mxu0 0.0
        %533 = vmatprep.subr.mxu0 0.0
        %534 = vmatpush1.msra.mxu0 0.0
        %535 = vmatprep.subr.mxu0 0.0
        %536 = vmatpush1.msra.mxu0 0.0
        %537 = vmatprep.subr.mxu0 0.0
        %538 = vmatpush1.msra.mxu0 0.0
        %539 = vmatprep.subr.mxu0 0.0
        %540 = vmatpush1.msra.mxu0 0.0
        %541 = vmatprep.subr.mxu0 0.0
        %542 = vmatpush1.msra.mxu0 0.0
        %543 = vmatprep.subr.mxu0 0.0
        %544 = vmatpush1.msra.mxu0 0.0
        %545 = vmatprep.subr.mxu0 0.0
        %546 = vmatpush1.msra.mxu0 0.0
        %547 = vmatprep.subr.mxu0 0.0
        %548 = vmatpush1.msra.mxu0 0.0
        %549 = vmatprep.subr.mxu0 0.0
        %550 = vmatpush1.msra.mxu0 0.0
        %551 = vmatprep.subr.mxu0 0.0
        %552 = vmatpush1.msra.mxu0 0.0
        %553 = vmatprep.subr.mxu0 0.0
        %554 = vmatpush1.msra.mxu0 0.0
        %555 = vmatprep.subr.mxu0 0.0
        %556 = vmatpush1.msra.mxu0 0.0
        %557 = vmatprep.subr.mxu0 0.0
        %558 = vmatpush1.msra.mxu0 0.0
        %559 = vmatprep.subr.mxu0 0.0
        %560 = vmatpush1.msra.mxu0 0.0
        %561 = vmatprep.mubr.f32.mxu0 0.0
        %562 = vmatmul.mubr.f32.gmra.mrb[0].mxu0 %v495
        %v563 = vpop.f32.mrb[0].mxu0
        %v564 = vadd.f32 %v491, %v563
        %v565 = vpop.f32.mrb[0].mxu0
        %566 = vdwg.mxu0
        %v567 = vmax.f32 %v564, 0.0
        %v568 = vlaneseq
        %v569 = vand.u32 %v568, 127
        %v570 = vstv %s480
        %vm571 = vcmp.ge.s32.totalorder %v569, %v570
        %s572 = sadd.s32 %s480, 32
        %v573 = vstv %s572
        %vm574 = vcmp.lt.s32.totalorder %v569, %v573
        %vm575 = vmand %vm571, %vm574
        %v576 = vsel %vm575, 1, 0
        %v577 = vcvt.s32.f32 %v576
        %v578 = vld [vmem:[#allocation7] sm:$0xff]
        %v579 = vld [vmem:[#allocation9] sm:$0xff]
        %v580 = vmul.f32 %v578, %v577
        %v581 = vmul.f32 %v579, %v577
        %v582 = vld [vmem:[%s6] sm:$0xff]
        %v583 = vld [vmem:[%s6 + $0x8] sm:$0xff]
        %v584 = vld [vmem:[%s6 + $0x10] sm:$0xff]
        %v585 = vld [vmem:[%s6 + $0x18] sm:$0xff]
        %v586 = vld [vmem:[%s6 + $0x20] sm:$0xff]
        %v587 = vld [vmem:[%s6 + $0x28] sm:$0xff]
        %v588 = vld [vmem:[%s6 + $0x30] sm:$0xff]
        %v589 = vld [vmem:[%s6 + $0x38] sm:$0xff]
        %v590 = vld [vmem:[%s6 + $0x40] sm:$0xff]
        %v591 = vld [vmem:[%s6 + $0x48] sm:$0xff]
        %v592 = vld [vmem:[%s6 + $0x50] sm:$0xff]
        %v593 = vld [vmem:[%s6 + $0x58] sm:$0xff]
        %v594 = vld [vmem:[%s6 + $0x60] sm:$0xff]
        %v595 = vld [vmem:[%s6 + $0x68] sm:$0xff]
        %v596 = vld [vmem:[%s6 + $0x70] sm:$0xff]
        %v597 = vld [vmem:[%s6 + $0x78] sm:$0xff]
        %v598 = vld [vmem:[%s6 + $0x80] sm:$0xff]
        %v599 = vld [vmem:[%s6 + $0x88] sm:$0xff]
        %v600 = vld [vmem:[%s6 + $0x90] sm:$0xff]
        %v601 = vld [vmem:[%s6 + $0x98] sm:$0xff]
        %v602 = vld [vmem:[%s6 + $0xa0] sm:$0xff]
        %v603 = vld [vmem:[%s6 + $0xa8] sm:$0xff]
        %v604 = vld [vmem:[%s6 + $0xb0] sm:$0xff]
        %v605 = vld [vmem:[%s6 + $0xb8] sm:$0xff]
        %v606 = vld [vmem:[%s6 + $0xc0] sm:$0xff]
        %v607 = vld [vmem:[%s6 + $0xc8] sm:$0xff]
        %v608 = vld [vmem:[%s6 + $0xd0] sm:$0xff]
        %v609 = vld [vmem:[%s6 + $0xd8] sm:$0xff]
        %v610 = vld [vmem:[%s6 + $0xe0] sm:$0xff]
        %v611 = vld [vmem:[%s6 + $0xe8] sm:$0xff]
        %v612 = vld [vmem:[%s6 + $0xf0] sm:$0xff]
        %v613 = vld [vmem:[%s6 + $0xf8] sm:$0xff]
        %v614 = vld [vmem:[%s6 + $0x100] sm:$0xff]
        %v615 = vld [vmem:[%s6 + $0x108] sm:$0xff]
        %v616 = vld [vmem:[%s6 + $0x110] sm:$0xff]
        %v617 = vld [vmem:[%s6 + $0x118] sm:$0xff]
        %v618 = vld [vmem:[%s6 + $0x120] sm:$0xff]
        %v619 = vld [vmem:[%s6 + $0x128] sm:$0xff]
        %v620 = vld [vmem:[%s6 + $0x130] sm:$0xff]
        %v621 = vld [vmem:[%s6 + $0x138] sm:$0xff]
        %v622 = vld [vmem:[%s6 + $0x140] sm:$0xff]
        %v623 = vld [vmem:[%s6 + $0x148] sm:$0xff]
        %v624 = vld [vmem:[%s6 + $0x150] sm:$0xff]
        %v625 = vld [vmem:[%s6 + $0x158] sm:$0xff]
        %v626 = vld [vmem:[%s6 + $0x160] sm:$0xff]
        %v627 = vld [vmem:[%s6 + $0x168] sm:$0xff]
        %v628 = vld [vmem:[%s6 + $0x170] sm:$0xff]
        %v629 = vld [vmem:[%s6 + $0x178] sm:$0xff]
        %v630 = vld [vmem:[%s6 + $0x180] sm:$0xff]
        %v631 = vld [vmem:[%s6 + $0x188] sm:$0xff]
        %v632 = vld [vmem:[%s6 + $0x190] sm:$0xff]
        %v633 = vld [vmem:[%s6 + $0x198] sm:$0xff]
        %v634 = vld [vmem:[%s6 + $0x1a0] sm:$0xff]
        %v635 = vld [vmem:[%s6 + $0x1a8] sm:$0xff]
        %v636 = vld [vmem:[%s6 + $0x1b0] sm:$0xff]
        %v637 = vld [vmem:[%s6 + $0x1b8] sm:$0xff]
        %v638 = vld [vmem:[%s6 + $0x1c0] sm:$0xff]
        %v639 = vld [vmem:[%s6 + $0x1c8] sm:$0xff]
        %v640 = vld [vmem:[%s6 + $0x1d0] sm:$0xff]
        %v641 = vld [vmem:[%s6 + $0x1d8] sm:$0xff]
        %v642 = vld [vmem:[%s6 + $0x1e0] sm:$0xff]
        %v643 = vld [vmem:[%s6 + $0x1e8] sm:$0xff]
        %v644 = vld [vmem:[%s6 + $0x1f0] sm:$0xff]
        %v645 = vld [vmem:[%s6 + $0x1f8] sm:$0xff]
        %v646 = vld [vmem:[%s8] sm:$0xff]
        %v647 = vld [vmem:[%s8 + $0x8] sm:$0xff]
        %v648 = vld [vmem:[%s8 + $0x10] sm:$0xff]
        %v649 = vld [vmem:[%s8 + $0x18] sm:$0xff]
        %v650 = vld [vmem:[%s8 + $0x20] sm:$0xff]
        %v651 = vld [vmem:[%s8 + $0x28] sm:$0xff]
        %v652 = vld [vmem:[%s8 + $0x30] sm:$0xff]
        %v653 = vld [vmem:[%s8 + $0x38] sm:$0xff]
        %v654 = vld [vmem:[%s8 + $0x40] sm:$0xff]
        %v655 = vld [vmem:[%s8 + $0x48] sm:$0xff]
        %v656 = vld [vmem:[%s8 + $0x50] sm:$0xff]
        %v657 = vld [vmem:[%s8 + $0x58] sm:$0xff]
        %v658 = vld [vmem:[%s8 + $0x60] sm:$0xff]
        %v659 = vld [vmem:[%s8 + $0x68] sm:$0xff]
        %v660 = vld [vmem:[%s8 + $0x70] sm:$0xff]
        %v661 = vld [vmem:[%s8 + $0x78] sm:$0xff]
        %v662 = vld [vmem:[%s8 + $0x80] sm:$0xff]
        %v663 = vld [vmem:[%s8 + $0x88] sm:$0xff]
        %v664 = vld [vmem:[%s8 + $0x90] sm:$0xff]
        %v665 = vld [vmem:[%s8 + $0x98] sm:$0xff]
        %v666 = vld [vmem:[%s8 + $0xa0] sm:$0xff]
        %v667 = vld [vmem:[%s8 + $0xa8] sm:$0xff]
        %v668 = vld [vmem:[%s8 + $0xb0] sm:$0xff]
        %v669 = vld [vmem:[%s8 + $0xb8] sm:$0xff]
        %v670 = vld [vmem:[%s8 + $0xc0] sm:$0xff]
        %v671 = vld [vmem:[%s8 + $0xc8] sm:$0xff]
        %v672 = vld [vmem:[%s8 + $0xd0] sm:$0xff]
        %v673 = vld [vmem:[%s8 + $0xd8] sm:$0xff]
        %v674 = vld [vmem:[%s8 + $0xe0] sm:$0xff]
        %v675 = vld [vmem:[%s8 + $0xe8] sm:$0xff]
        %v676 = vld [vmem:[%s8 + $0xf0] sm:$0xff]
        %v677 = vld [vmem:[%s8 + $0xf8] sm:$0xff]
        %v678 = vld [vmem:[%s8 + $0x100] sm:$0xff]
        %v679 = vld [vmem:[%s8 + $0x108] sm:$0xff]
        %v680 = vld [vmem:[%s8 + $0x110] sm:$0xff]
        %v681 = vld [vmem:[%s8 + $0x118] sm:$0xff]
        %v682 = vld [vmem:[%s8 + $0x120] sm:$0xff]
        %v683 = vld [vmem:[%s8 + $0x128] sm:$0xff]
        %v684 = vld [vmem:[%s8 + $0x130] sm:$0xff]
        %v685 = vld [vmem:[%s8 + $0x138] sm:$0xff]
        %v686 = vld [vmem:[%s8 + $0x140] sm:$0xff]
        %v687 = vld [vmem:[%s8 + $0x148] sm:$0xff]
        %v688 = vld [vmem:[%s8 + $0x150] sm:$0xff]
        %v689 = vld [vmem:[%s8 + $0x158] sm:$0xff]
        %v690 = vld [vmem:[%s8 + $0x160] sm:$0xff]
        %v691 = vld [vmem:[%s8 + $0x168] sm:$0xff]
        %v692 = vld [vmem:[%s8 + $0x170] sm:$0xff]
        %v693 = vld [vmem:[%s8 + $0x178] sm:$0xff]
        %v694 = vld [vmem:[%s8 + $0x180] sm:$0xff]
        %v695 = vld [vmem:[%s8 + $0x188] sm:$0xff]
        %v696 = vld [vmem:[%s8 + $0x190] sm:$0xff]
        %v697 = vld [vmem:[%s8 + $0x198] sm:$0xff]
        %v698 = vld [vmem:[%s8 + $0x1a0] sm:$0xff]
        %v699 = vld [vmem:[%s8 + $0x1a8] sm:$0xff]
        %v700 = vld [vmem:[%s8 + $0x1b0] sm:$0xff]
        %v701 = vld [vmem:[%s8 + $0x1b8] sm:$0xff]
        %v702 = vld [vmem:[%s8 + $0x1c0] sm:$0xff]
        %v703 = vld [vmem:[%s8 + $0x1c8] sm:$0xff]
        %v704 = vld [vmem:[%s8 + $0x1d0] sm:$0xff]
        %v705 = vld [vmem:[%s8 + $0x1d8] sm:$0xff]
        %v706 = vld [vmem:[%s8 + $0x1e0] sm:$0xff]
        %v707 = vld [vmem:[%s8 + $0x1e8] sm:$0xff]
        %v708 = vld [vmem:[%s8 + $0x1f0] sm:$0xff]
        %v709 = vld [vmem:[%s8 + $0x1f8] sm:$0xff]
        %710 = vmatprep.subr.mxu0 %v647
        %711 = vmatpush1.msra.mxu0 %v646
        %712 = vmatprep.subr.mxu0 %v651
        %713 = vmatpush1.msra.mxu0 %v650
        %714 = vmatprep.subr.mxu0 %v655
        %715 = vmatpush1.msra.mxu0 %v654
        %716 = vmatprep.subr.mxu0 %v659
        %717 = vmatpush1.msra.mxu0 %v658
        %718 = vmatprep.subr.mxu0 %v663
        %719 = vmatpush1.msra.mxu0 %v662
        %720 = vmatprep.subr.mxu0 %v667
        %721 = vmatpush1.msra.mxu0 %v666
        %722 = vmatprep.subr.mxu0 %v671
        %723 = vmatpush1.msra.mxu0 %v670
        %724 = vmatprep.subr.mxu0 %v675
        %725 = vmatpush1.msra.mxu0 %v674
        %726 = vmatprep.subr.mxu0 %v679
        %727 = vmatpush1.msra.mxu0 %v678
        %728 = vmatprep.subr.mxu0 %v683
        %729 = vmatpush1.msra.mxu0 %v682
        %730 = vmatprep.subr.mxu0 %v687
        %731 = vmatpush1.msra.mxu0 %v686
        %732 = vmatprep.subr.mxu0 %v691
        %733 = vmatpush1.msra.mxu0 %v690
        %734 = vmatprep.subr.mxu0 %v695
        %735 = vmatpush1.msra.mxu0 %v694
        %736 = vmatprep.subr.mxu0 %v699
        %737 = vmatpush1.msra.mxu0 %v698
        %738 = vmatprep.subr.mxu0 %v703
        %739 = vmatpush1.msra.mxu0 %v702
        %740 = vmatprep.subr.mxu0 %v707
        %741 = vmatpush1.msra.mxu0 %v706
        %742 = vmatprep.subr.mxu0 0.0
        %743 = vmatpush1.msra.mxu0 0.0
        %744 = vmatprep.subr.mxu0 0.0
        %745 = vmatpush1.msra.mxu0 0.0
        %746 = vmatprep.subr.mxu0 0.0
        %747 = vmatpush1.msra.mxu0 0.0
        %748 = vmatprep.subr.mxu0 0.0
        %749 = vmatpush1.msra.mxu0 0.0
        %750 = vmatprep.subr.mxu0 0.0
        %751 = vmatpush1.msra.mxu0 0.0
        %752 = vmatprep.subr.mxu0 0.0
        %753 = vmatpush1.msra.mxu0 0.0
        %754 = vmatprep.subr.mxu0 0.0
        %755 = vmatpush1.msra.mxu0 0.0
        %756 = vmatprep.subr.mxu0 0.0
        %757 = vmatpush1.msra.mxu0 0.0
        %758 = vmatprep.subr.mxu0 0.0
        %759 = vmatpush1.msra.mxu0 0.0
        %760 = vmatprep.subr.mxu0 0.0
        %761 = vmatpush1.msra.mxu0 0.0
        %762 = vmatprep.subr.mxu0 0.0
        %763 = vmatpush1.msra.mxu0 0.0
        %764 = vmatprep.subr.mxu0 0.0
        %765 = vmatpush1.msra.mxu0 0.0
        %766 = vmatprep.subr.mxu0 0.0
        %767 = vmatpush1.msra.mxu0 0.0
        %768 = vmatprep.subr.mxu0 0.0
        %769 = vmatpush1.msra.mxu0 0.0
        %770 = vmatprep.subr.mxu0 0.0
        %771 = vmatpush1.msra.mxu0 0.0
        %772 = vmatprep.subr.mxu0 0.0
        %773 = vmatpush1.msra.mxu0 0.0
        %774 = vmatprep.mubr.f32.mxu0 0.0
        %775 = vmatmul.mubr.f32.gmra.mrb[0].mxu0 %v580
        %v776 = vpop.f32.mrb[0].mxu0
        %v777 = vadd.f32 0.0, %v776
        %v778 = vpop.f32.mrb[0].mxu0
        %v779 = vadd.f32 0.0, %v778
        %780 = vdwg.mxu0
        %781 = vmatprep.subr.mxu0 %v649
        %782 = vmatpush1.msra.mxu0 %v648
        %783 = vmatprep.subr.mxu0 %v653
        %784 = vmatpush1.msra.mxu0 %v652
        %785 = vmatprep.subr.mxu0 %v657
        %786 = vmatpush1.msra.mxu0 %v656
        %787 = vmatprep.subr.mxu0 %v661
        %788 = vmatpush1.msra.mxu0 %v660
        %789 = vmatprep.subr.mxu0 %v665
        %790 = vmatpush1.msra.mxu0 %v664
        %791 = vmatprep.subr.mxu0 %v669
        %792 = vmatpush1.msra.mxu0 %v668
        %793 = vmatprep.subr.mxu0 %v673
        %794 = vmatpush1.msra.mxu0 %v672
        %795 = vmatprep.subr.mxu0 %v677
        %796 = vmatpush1.msra.mxu0 %v676
        %797 = vmatprep.subr.mxu0 %v681
        %798 = vmatpush1.msra.mxu0 %v680
        %799 = vmatprep.subr.mxu0 %v685
        %800 = vmatpush1.msra.mxu0 %v684
        %801 = vmatprep.subr.mxu0 %v689
        %802 = vmatpush1.msra.mxu0 %v688
        %803 = vmatprep.subr.mxu0 %v693
        %804 = vmatpush1.msra.mxu0 %v692
        %805 = vmatprep.subr.mxu0 %v697
        %806 = vmatpush1.msra.mxu0 %v696
        %807 = vmatprep.subr.mxu0 %v701
        %808 = vmatpush1.msra.mxu0 %v700
        %809 = vmatprep.subr.mxu0 %v705
        %810 = vmatpush1.msra.mxu0 %v704
        %811 = vmatprep.subr.mxu0 %v709
        %812 = vmatpush1.msra.mxu0 %v708
        %813 = vmatprep.subr.mxu0 0.0
        %814 = vmatpush1.msra.mxu0 0.0
        %815 = vmatprep.subr.mxu0 0.0
        %816 = vmatpush1.msra.mxu0 0.0
        %817 = vmatprep.subr.mxu0 0.0
        %818 = vmatpush1.msra.mxu0 0.0
        %819 = vmatprep.subr.mxu0 0.0
        %820 = vmatpush1.msra.mxu0 0.0
        %821 = vmatprep.subr.mxu0 0.0
        %822 = vmatpush1.msra.mxu0 0.0
        %823 = vmatprep.subr.mxu0 0.0
        %824 = vmatpush1.msra.mxu0 0.0
        %825 = vmatprep.subr.mxu0 0.0
        %826 = vmatpush1.msra.mxu0 0.0
        %827 = vmatprep.subr.mxu0 0.0
        %828 = vmatpush1.msra.mxu0 0.0
        %829 = vmatprep.subr.mxu0 0.0
        %830 = vmatpush1.msra.mxu0 0.0
        %831 = vmatprep.subr.mxu0 0.0
        %832 = vmatpush1.msra.mxu0 0.0
        %833 = vmatprep.subr.mxu0 0.0
        %834 = vmatpush1.msra.mxu0 0.0
        %835 = vmatprep.subr.mxu0 0.0
        %836 = vmatpush1.msra.mxu0 0.0
        %837 = vmatprep.subr.mxu0 0.0
        %838 = vmatpush1.msra.mxu0 0.0
        %839 = vmatprep.subr.mxu0 0.0
        %840 = vmatpush1.msra.mxu0 0.0
        %841 = vmatprep.subr.mxu0 0.0
        %842 = vmatpush1.msra.mxu0 0.0
        %843 = vmatprep.subr.mxu0 0.0
        %844 = vmatpush1.msra.mxu0 0.0
        %845 = vmatprep.mubr.f32.mxu0 0.0
        %846 = vmatmul.mubr.f32.gmra.mrb[0].mxu0 %v580
        %v847 = vpop.f32.mrb[0].mxu0
        %v848 = vadd.f32 0.0, %v847
        %v849 = vpop.f32.mrb[0].mxu0
        %v850 = vadd.f32 0.0, %v849
        %851 = vdwg.mxu0
        %852 = vmatprep.subr.mxu0 %v583
        %853 = vmatpush1.msra.mxu0 %v582
        %854 = vmatprep.subr.mxu0 %v587
        %855 = vmatpush1.msra.mxu0 %v586
        %856 = vmatprep.subr.mxu0 %v591
        %857 = vmatpush1.msra.mxu0 %v590
        %858 = vmatprep.subr.mxu0 %v595
        %859 = vmatpush1.msra.mxu0 %v594
        %860 = vmatprep.subr.mxu0 %v599
        %861 = vmatpush1.msra.mxu0 %v598
        %862 = vmatprep.subr.mxu0 %v603
        %863 = vmatpush1.msra.mxu0 %v602
        %864 = vmatprep.subr.mxu0 %v607
        %865 = vmatpush1.msra.mxu0 %v606
        %866 = vmatprep.subr.mxu0 %v611
        %867 = vmatpush1.msra.mxu0 %v610
        %868 = vmatprep.subr.mxu0 %v615
        %869 = vmatpush1.msra.mxu0 %v614
        %870 = vmatprep.subr.mxu0 %v619
        %871 = vmatpush1.msra.mxu0 %v618
        %872 = vmatprep.subr.mxu0 %v623
        %873 = vmatpush1.msra.mxu0 %v622
        %874 = vmatprep.subr.mxu0 %v627
        %875 = vmatpush1.msra.mxu0 %v626
        %876 = vmatprep.subr.mxu0 %v631
        %877 = vmatpush1.msra.mxu0 %v630
        %878 = vmatprep.subr.mxu0 %v635
        %879 = vmatpush1.msra.mxu0 %v634
        %880 = vmatprep.subr.mxu0 %v639
        %881 = vmatpush1.msra.mxu0 %v638
        %882 = vmatprep.subr.mxu0 %v643
        %883 = vmatpush1.msra.mxu0 %v642
        %884 = vmatprep.subr.mxu0 0.0
        %885 = vmatpush1.msra.mxu0 0.0
        %886 = vmatprep.subr.mxu0 0.0
        %887 = vmatpush1.msra.mxu0 0.0
        %888 = vmatprep.subr.mxu0 0.0
        %889 = vmatpush1.msra.mxu0 0.0
        %890 = vmatprep.subr.mxu0 0.0
        %891 = vmatpush1.msra.mxu0 0.0
        %892 = vmatprep.subr.mxu0 0.0
        %893 = vmatpush1.msra.mxu0 0.0
        %894 = vmatprep.subr.mxu0 0.0
        %895 = vmatpush1.msra.mxu0 0.0
        %896 = vmatprep.subr.mxu0 0.0
        %897 = vmatpush1.msra.mxu0 0.0
        %898 = vmatprep.subr.mxu0 0.0
        %899 = vmatpush1.msra.mxu0 0.0
        %900 = vmatprep.subr.mxu0 0.0
        %901 = vmatpush1.msra.mxu0 0.0
        %902 = vmatprep.subr.mxu0 0.0
        %903 = vmatpush1.msra.mxu0 0.0
        %904 = vmatprep.subr.mxu0 0.0
        %905 = vmatpush1.msra.mxu0 0.0
        %906 = vmatprep.subr.mxu0 0.0
        %907 = vmatpush1.msra.mxu0 0.0
        %908 = vmatprep.subr.mxu0 0.0
        %909 = vmatpush1.msra.mxu0 0.0
        %910 = vmatprep.subr.mxu0 0.0
        %911 = vmatpush1.msra.mxu0 0.0
        %912 = vmatprep.subr.mxu0 0.0
        %913 = vmatpush1.msra.mxu0 0.0
        %914 = vmatprep.subr.mxu0 0.0
        %915 = vmatpush1.msra.mxu0 0.0
        %916 = vmatprep.mubr.f32.mxu0 0.0
        %917 = vmatmul.mubr.f32.gmra.mrb[0].mxu0 %v567
        %v918 = vpop.f32.mrb[0].mxu0
        %v919 = vadd.f32 %v777, %v918
        %v920 = vpop.f32.mrb[0].mxu0
        %v921 = vadd.f32 %v779, %v920
        %922 = vdwg.mxu0
        %923 = vmatprep.subr.mxu0 %v585
        %924 = vmatpush1.msra.mxu0 %v584
        %925 = vmatprep.subr.mxu0 %v589
        %926 = vmatpush1.msra.mxu0 %v588
        %927 = vmatprep.subr.mxu0 %v593
        %928 = vmatpush1.msra.mxu0 %v592
        %929 = vmatprep.subr.mxu0 %v597
        %930 = vmatpush1.msra.mxu0 %v596
        %931 = vmatprep.subr.mxu0 %v601
        %932 = vmatpush1.msra.mxu0 %v600
        %933 = vmatprep.subr.mxu0 %v605
        %934 = vmatpush1.msra.mxu0 %v604
        %935 = vmatprep.subr.mxu0 %v609
        %936 = vmatpush1.msra.mxu0 %v608
        %937 = vmatprep.subr.mxu0 %v613
        %938 = vmatpush1.msra.mxu0 %v612
        %939 = vmatprep.subr.mxu0 %v617
        %940 = vmatpush1.msra.mxu0 %v616
        %941 = vmatprep.subr.mxu0 %v621
        %942 = vmatpush1.msra.mxu0 %v620
        %943 = vmatprep.subr.mxu0 %v625
        %944 = vmatpush1.msra.mxu0 %v624
        %945 = vmatprep.subr.mxu0 %v629
        %946 = vmatpush1.msra.mxu0 %v628
        %947 = vmatprep.subr.mxu0 %v633
        %948 = vmatpush1.msra.mxu0 %v632
        %949 = vmatprep.subr.mxu0 %v637
        %950 = vmatpush1.msra.mxu0 %v636
        %951 = vmatprep.subr.mxu0 %v641
        %952 = vmatpush1.msra.mxu0 %v640
        %953 = vmatprep.subr.mxu0 %v645
        %954 = vmatpush1.msra.mxu0 %v644
        %955 = vmatprep.subr.mxu0 0.0
        %956 = vmatpush1.msra.mxu0 0.0
        %957 = vmatprep.subr.mxu0 0.0
        %958 = vmatpush1.msra.mxu0 0.0
        %959 = vmatprep.subr.mxu0 0.0
        %960 = vmatpush1.msra.mxu0 0.0
        %961 = vmatprep.subr.mxu0 0.0
        %962 = vmatpush1.msra.mxu0 0.0
        %963 = vmatprep.subr.mxu0 0.0
        %964 = vmatpush1.msra.mxu0 0.0
        %965 = vmatprep.subr.mxu0 0.0
        %966 = vmatpush1.msra.mxu0 0.0
        %967 = vmatprep.subr.mxu0 0.0
        %968 = vmatpush1.msra.mxu0 0.0
        %969 = vmatprep.subr.mxu0 0.0
        %970 = vmatpush1.msra.mxu0 0.0
        %971 = vmatprep.subr.mxu0 0.0
        %972 = vmatpush1.msra.mxu0 0.0
        %973 = vmatprep.subr.mxu0 0.0
        %974 = vmatpush1.msra.mxu0 0.0
        %975 = vmatprep.subr.mxu0 0.0
        %976 = vmatpush1.msra.mxu0 0.0
        %977 = vmatprep.subr.mxu0 0.0
        %978 = vmatpush1.msra.mxu0 0.0
        %979 = vmatprep.subr.mxu0 0.0
        %980 = vmatpush1.msra.mxu0 0.0
        %981 = vmatprep.subr.mxu0 0.0
        %982 = vmatpush1.msra.mxu0 0.0
        %983 = vmatprep.subr.mxu0 0.0
        %984 = vmatpush1.msra.mxu0 0.0
        %985 = vmatprep.subr.mxu0 0.0
        %986 = vmatpush1.msra.mxu0 0.0
        %987 = vmatprep.mubr.f32.mxu0 0.0
        %988 = vmatmul.mubr.f32.gmra.mrb[0].mxu0 %v567
        %v989 = vpop.f32.mrb[0].mxu0
        %v990 = vadd.f32 %v848, %v989
        %v991 = vpop.f32.mrb[0].mxu0
        %v992 = vadd.f32 %v850, %v991
        %993 = vdwg.mxu0
        %v994 = vld [vmem:[%s7] sm:$0xf]
        %v996 = vlaneseq
        %v997 = vshrl.u32 %v996, 7
        %v998 = vsub.s32 0, %v997
        %v999 = vrot.slane %v994, %v998
        %v1000 = vlaneseq
        %v1001 = vshrl.u32 %v1000, 7
        %v1002 = vsub.s32 1, %v1001
        %v1003 = vrot.slane %v994, %v1002
        %v1004 = vlaneseq
        %v1005 = vshrl.u32 %v1004, 7
        %v1006 = vsub.s32 2, %v1005
        %v1007 = vrot.slane %v994, %v1006
        %v1008 = vlaneseq
        %v1009 = vshrl.u32 %v1008, 7
        %v1010 = vsub.s32 3, %v1009
        %v1011 = vrot.slane %v994, %v1010
        %v1016 = vadd.f32 %v919, %v999
        %v1017 = vadd.f32 %v921, %v1003
        %v1018 = vadd.f32 %v990, %v1007
        %v1019 = vadd.f32 %v992, %v1011
        %v1020 = vxor.u32 %v1016, 2147483648
        %v1021 = vxor.u32 %v1017, 2147483648
        %v1022 = vxor.u32 %v1018, 2147483648
        %v1023 = vmul.f32 %v1020, 1.442695
        %v1024 = vpow.pop %v1023
        %v1025 = vmul.f32 %v1021, 1.442695
        %v1026 = vpow.pop %v1025
        %v1027 = vmul.f32 %v1022, 1.442695
        %v1028 = vpow.pop %v1027
        %v1029 = vadd.f32 %v1024, 1.0
        %v1030 = vadd.f32 %v1026, 1.0
        %v1031 = vadd.f32 %v1028, 1.0
        %v1032 = vrcp.pop %v1029
        %v1033 = vmul.f32 1.0, %v1032
        %v1034 = vrcp.pop %v1030
        %v1035 = vmul.f32 1.0, %v1034
        %v1036 = vrcp.pop %v1031
        %v1037 = vmul.f32 1.0, %v1036
        %v1038 = vtanh.pop %v1019
        %v1039 = vmul.f32 %v1035, %v581
        %v1040 = vmul.f32 %v1033, %v1038
        %v1041 = vadd.f32 %v1039, %v1040
        %v1042 = vtanh.pop %v1041
        %v1043 = vmul.f32 %v1037, %v1042
        %1044 = vst [vmem:[#allocation7] sm:$0xff] %v1043
        %1045 = vst [vmem:[#allocation9] sm:$0xff] %v1041
        %v1046 = vmul.f32 %v1043, %v577
        %v1047 = vmul.f32 %v1046, %v1046
        %1048 = vadd.xlane.f32.xlu0 %v1047
        %v1049 = vpop.xlane.xlu0 %1048
        %v1050 = vrsqrt.pop %v1049
        %v1051 = vmul.f32 %v1049, %v1050
        %vm1052 = vcmp.eq.f32.partialorder %v1049, inf
        %v1053 = vsel %vm1052, %v1049, %v1051
        %vm1054 = vcmp.eq.f32.partialorder %v1049, 0.0
        %v1055 = vand.u32 %v1049, 2147483648
        %v1056 = vsel %vm1054, %v1055, %v1053
        %v1057 = vmax.f32 %v1056, 1e-12
        %v1058 = vrcp.pop %v1057
        %v1059 = vmul.f32 %v1046, %v1058
        %1060 = vst [vmem:[%s453] sm:$0xff] %v1059
        %v1061 = vld [vmem:[%s465] sm:$0x1]
        %v1063 = vlaneseq
        %v1064 = vshrl.u32 %v1063, 7
        %v1065 = vsub.s32 0, %v1064
        %v1066 = vrot.slane %v1061, %v1065
        %v1068 = vmul.f32 %v1043, %v1066
        %1069 = vadd.xlane.f32.xlu0 %v1068
        %v1070 = vpop.xlane.xlu0 %1069
        %s1071 = sld [smem:[#allocation4]]
        %v1072 = vstv %s1071
        %v1073 = vadd.f32 %v1070, %v1072
        %vm1074 = vcmp.eq.s32.totalorder %v569, 32
        %v1075 = vsel %vm1074, 1, 0
        %v1076 = vcvt.s32.f32 %v1075
        %v1077 = vmul.f32 %v1073, %v1076
        %v1078 = vadd.f32 %v567, %v1077
        %1079 = vst [vmem:[%s470] sm:$0xff] %v1078
        %p1080 = scmp.lt.s32.totalorder %s37, 7
        %s1081 = scalar_select %p1080, %s37, 7
        %s1082 = smul.addr %s1081, 8
        %s1083 = scalar_lea.vmem %s11, %s1082
        %s1084 = sand.u32 %s293, 1
        %s1085 = scalar_lea.sflag [#allocation6], %s1084
        %s1086 = sand.u32 %s293, 1
        %s1087 = smul.addr %s1086, 8
        %s1088 = scalar_lea.vmem [#allocation5], %s1087
        // Predicated region
        $region65: #{manager_dlstm_forward_seq.1} parent=59 // pred_check
          %p1089 = pneg %p277
        $region66: #{manager_dlstm_forward_seq.1} parent=59 // pred_check_branch
          %1091 = sbr.rel (%p1089) target = $region68
        $region67: #{manager_dlstm_forward_seq.1} parent=59 // pred_region
          _
        $region68: #{manager_dlstm_forward_seq.1} parent=59 // pred_fallthru
          _
        // Predicated region
        $region69: #{manager_dlstm_forward_seq.1} parent=59 // pred_check
          %p1092 = pneg %p303
        $region70: #{manager_dlstm_forward_seq.1} parent=59 // pred_check_branch
          %1094 = sbr.rel (%p1092) target = $region72
        $region71: #{manager_dlstm_forward_seq.1} parent=59 // pred_region
          %s1096 = ssub.s32 128, 128
          %1097 = vsyncadd %s1085, %s1096
          %s1098 = smul.addr %s37, 128
          %s1099 = scalar_lea.hbm %s12, %s1098
          %s1101 = sshll.u32 %s1088, 4
          %s1102 = int_to_ptr.vmem [resolvable:$true] %s1101
          %1104 = dma.vmem_to_hbm [thread:$0]  %s1102, 128, %s1099, %s1085
        $region72: #{manager_dlstm_forward_seq.1} parent=59 // pred_fallthru
          _
        // Predicated region
        $region73: #{manager_dlstm_forward_seq.1} parent=59 // pred_check
          %p1105 = pneg %p324
        $region74: #{manager_dlstm_forward_seq.1} parent=59 // pred_check_branch
          %1107 = sbr.rel (%p1105) target = $region76
        $region75: #{manager_dlstm_forward_seq.1} parent=59 // pred_region
          %s1109 = ssub.s32 128, 128
          %1110 = vsyncadd [#allocation8], %s1109
          %s1112 = sshll.u32 [#allocation7], 4
          %s1113 = int_to_ptr.vmem [resolvable:$true] %s1112
          %1115 = dma.vmem_to_hbm [thread:$0]  %s1113, 128, %s13, [#allocation8]
        $region76: #{manager_dlstm_forward_seq.1} parent=59 // pred_fallthru
          _
        // Predicated region
        $region77: #{manager_dlstm_forward_seq.1} parent=59 // pred_check
          %p1116 = pneg %p345
        $region78: #{manager_dlstm_forward_seq.1} parent=59 // pred_check_branch
          %1118 = sbr.rel (%p1116) target = $region80
        $region79: #{manager_dlstm_forward_seq.1} parent=59 // pred_region
          %s1120 = ssub.s32 128, 128
          %1121 = vsyncadd [#allocation8], %s1120
          %s1123 = sshll.u32 [#allocation9], 4
          %s1124 = int_to_ptr.vmem [resolvable:$true] %s1123
          %1126 = dma.vmem_to_hbm [thread:$0]  %s1124, 128, %s14, [#allocation8]
        $region80: #{manager_dlstm_forward_seq.1} parent=59 // pred_fallthru
          _
        // Predicated region
        $region81: #{manager_dlstm_forward_seq.1} parent=59 // pred_check
          %p1127 = pneg %p324
        $region82: #{manager_dlstm_forward_seq.1} parent=59 // pred_check_branch
          %1129 = sbr.rel (%p1127) target = $region84
        $region83: #{manager_dlstm_forward_seq.1} parent=59 // pred_region
          %1130 = dma.done [#allocation8], 128
        $region84: #{manager_dlstm_forward_seq.1} parent=59 // pred_fallthru
          _
        // Predicated region
        $region85: #{manager_dlstm_forward_seq.1} parent=59 // pred_check
          %p1131 = pneg %p345
        $region86: #{manager_dlstm_forward_seq.1} parent=59 // pred_check_branch
          %1133 = sbr.rel (%p1131) target = $region88
        $region87: #{manager_dlstm_forward_seq.1} parent=59 // pred_region
          %1134 = dma.done [#allocation8], 128
        $region88: #{manager_dlstm_forward_seq.1} parent=59 // pred_fallthru
          _
      $region60: #{manager_dlstm_forward_seq.1} parent=5 // pred_fallthru
        _
      %p1135 = scmp.le.s32.totalorder 2, %s32
      // Predicated region
      $region89: #{manager_dlstm_forward_seq.1} parent=5 // pred_check
        %p1136 = pneg %p1135
      $region90: #{manager_dlstm_forward_seq.1} parent=5 // pred_check_branch
        %1138 = sbr.rel (%p1136) target = $region92
      $region91: #{manager_dlstm_forward_seq.1} parent=5 // pred_region
        %s1139 = ssub.s32 %s32, 2
        // Predicated region
        $region93: #{manager_dlstm_forward_seq.1} parent=91 // pred_check
          %p1140 = pneg %p283
        $region94: #{manager_dlstm_forward_seq.1} parent=91 // pred_check_branch
          %1142 = sbr.rel (%p1140) target = $region96
        $region95: #{manager_dlstm_forward_seq.1} parent=91 // pred_region
          %p1143 = scmp.lt.s32.totalorder %s38, 7
          %s1144 = scalar_select %p1143, %s38, 7
          %s1145 = smul.addr %s1144, 8
          %s1146 = scalar_lea.vmem %s11, %s1145
        $region96: #{manager_dlstm_forward_seq.1} parent=91 // pred_fallthru
          _
        // Predicated region
        $region97: #{manager_dlstm_forward_seq.1} parent=91 // pred_check
          %p1147 = pneg %p309
        $region98: #{manager_dlstm_forward_seq.1} parent=91 // pred_check_branch
          %1149 = sbr.rel (%p1147) target = $region100
        $region99: #{manager_dlstm_forward_seq.1} parent=91 // pred_region
          %s1150 = sand.u32 %s294, 1
          %s1151 = scalar_lea.sflag [#allocation6], %s1150
          %s1152 = sand.u32 %s294, 1
          %s1153 = smul.addr %s1152, 8
          %s1154 = scalar_lea.vmem [#allocation5], %s1153
          %1155 = dma.done %s1151, 128
        $region100: #{manager_dlstm_forward_seq.1} parent=91 // pred_fallthru
          _
      $region92: #{manager_dlstm_forward_seq.1} parent=5 // pred_fallthru
        _
    $region6: #{manager_dlstm_forward_seq.1} parent=1 // loop_footer
      %s36 = sadd.s32 1, %s32
    $region7: #{manager_dlstm_forward_seq.1} parent=1 // loop_footer_branch
      %31 = sbr.rel target = $region3
    $region8: #{manager_dlstm_forward_seq.1} parent=1 // loop_exit
      _
    %1156 = vsyncpa [#allocation6], 1
    %s1157 = scalar_lea.sflag [#allocation6], 1
    %1158 = vsyncpa %s1157, 1
    %1159 = vsyncpa [#allocation8], 1

</llo_original>
